<compile_context>
chip_gen: v7x
topology: tpu7x:2x2x1
jax: 0.10.0
libtpu: 0.0.40
codegen_flags: <defaults>
</compile_context>

<pallas_src>
import numpy as np
import jax
import jax.numpy as jnp
from jax import lax
from jax.experimental import pallas as pl
from jax.experimental.pallas import tpu as pltpu

# ----------------------------- configuration --------------------------------
NUM_IR = 2                      # index-register qubits  -> P = 2**NUM_IR particles
NUM_NR = 3                      # network-register qubits -> D = 2**NUM_NR amplitudes
NUM_LAYERS = 2                  # StronglyEntanglingLayers depth
NUM_REUPLOAD = 2                # data re-uploads
SCORE_DIM = 2                   # MLP output dim
N_BATCH = 2                     # jets in the batch
HID = 16                        # MLP hidden width

P = 2 ** NUM_IR
D = 2 ** NUM_NR
B = N_BATCH * P
D2 = 2 * D                      # lane-packed [re | im] width

# packed parameter slab layout (rows; COLS lanes wide), all sections 8-aligned
COLS = max(D2, HID)                               # 16
SEL_OFF = 0                                       # NUM_REUPLOAD blocks of D2 rows
ZW1_OFF = NUM_REUPLOAD * D2                       # 32
B1_OFF = ZW1_OFF + D2                             # 48
W2_OFF = ((B1_OFF + 1 + 7) // 8) * 8              # 56
B2_OFF = W2_OFF + HID                             # 72
SLAB_ROWS = ((B2_OFF + 1 + 7) // 8) * 8           # 80

INV_SQRT2 = 0.7071067811865476
F32 = jnp.float32


# --------------------------- numpy circuit helpers ---------------------------
def rot_np(phi, theta, omega):
    """PennyLane qml.Rot(phi, theta, omega) = RZ(omega) RY(theta) RZ(phi)."""
    c, s = np.cos(theta / 2.0), np.sin(theta / 2.0)
    return np.array(
        [[np.exp(-0.5j * (phi + omega)) * c, -np.exp(0.5j * (phi - omega)) * s],
         [np.exp(-0.5j * (phi - omega)) * s, np.exp(0.5j * (phi + omega)) * c]],
        dtype=np.complex128)


H2 = np.array([[1.0, 1.0], [1.0, -1.0]], dtype=np.complex128) / np.sqrt(2.0)


def embed_1q(gate, wire, n):
    """Embed a 2x2 gate on `wire` (wire 0 = most significant) of an n-qubit register."""
    return np.kron(np.kron(np.eye(2 ** wire), gate), np.eye(2 ** (n - 1 - wire)))


def cnot_np(c_w, t_w, n):
    dim = 2 ** n
    M = np.zeros((dim, dim))
    for d in range(dim):
        if (d >> (n - 1 - c_w)) & 1:
            M[d ^ (1 << (n - 1 - t_w)), d] = 1.0
        else:
            M[d, d] = 1.0
    return M


def sel_unitary(w_r, n):
    """StronglyEntanglingLayers(weights=w_r (L,n,3), wires=range(n)) as a dense unitary."""
    dim = 2 ** n
    U = np.eye(dim, dtype=np.complex128)
    L = w_r.shape[0]
    for l in range(L):
        for k in range(n):
            U = embed_1q(rot_np(w_r[l, k, 0], w_r[l, k, 1], w_r[l, k, 2]), k, n) @ U
        if n > 1:
            rng = (l % (n - 1)) + 1
            for i in range(n):
                U = cnot_np(i, (i + rng) % n, n) @ U
    return U


def prepare_qcgnn_params(q_weights, w1, b1, w2, b2):
    """One-time host-side parameter preparation (cache per parameter set).

    Packs everything the kernel needs into ONE (SLAB_ROWS, COLS) f32 slab:
      rows [r*D2 : (r+1)*D2]  : SEL block unitary r as [[Ur^T, Ui^T], [-Ui^T, Ur^T]]
      rows [ZW1_OFF : +D2]    : zmat2 @ w1^T   (Z-sign projection fused into MLP-1)
      row   B1_OFF            : b1
      rows [W2_OFF : +HID]    : w2^T
      row   B2_OFF            : b2
    """
    qw = np.asarray(q_weights, np.float64)
    slab = np.zeros((SLAB_ROWS, COLS), np.float32)

    for r in range(NUM_REUPLOAD):
        UT = sel_unitary(qw[r], NUM_NR).T
        blk = np.zeros((D2, D2), np.float64)
        blk[:D, :D] = UT.real
        blk[:D, D:] = UT.imag
        blk[D:, :D] = -UT.imag
        blk[D:, D:] = UT.real
        slab[SEL_OFF + r * D2: SEL_OFF + (r + 1) * D2, :D2] = blk

    # Z sign matrix, duplicated over the [re | im] packing, fused into MLP layer 1.
    zmat2 = np.zeros((D2, NUM_NR), np.float64)
    for k in range(NUM_NR):
        for d in range(D):
            z = 1.0 - 2.0 * ((d >> (NUM_NR - 1 - k)) & 1)
            zmat2[d, k] = z
            zmat2[d + D, k] = z
    slab[ZW1_OFF:ZW1_OFF + D2, :HID] = zmat2 @ np.asarray(w1, np.float64).T
    slab[B1_OFF, :HID] = np.asarray(b1, np.float64)
    slab[W2_OFF:W2_OFF + HID, :SCORE_DIM] = np.asarray(w2, np.float64).T
    slab[B2_OFF, :SCORE_DIM] = np.asarray(b2, np.float64)
    return jnp.asarray(slab)


# ------------------------------- Pallas kernel --------------------------------
def _lane_roll(x, shift):
    """Cyclic roll along the last (lane) axis with a static shift.

    Implemented as static slice + concat (robust lowering at sub-128 lane
    widths); at (8,8)/(8,16) this stays entirely in-vreg.
    """
    n = x.shape[-1]
    shift = shift % n
    if shift == 0:
        return x
    return jnp.concatenate([x[:, n - shift:], x[:, :n - shift]], axis=-1)


def qcgnn_kernel(x_ref,     # (B, 3)  raw [theta | phi | omega], NaN-padded
                 par_ref,   # (SLAB_ROWS, COLS) packed SEL + MLP parameter slab
                 out_ref):  # (N_BATCH, SCORE_DIM)
    x = x_ref[...]
    nanmask = x != x                               # NaN detection, pure VPU
    xz = jnp.where(nanmask, 0.0, x)

    th = xz[:, 0:1]
    ph = xz[:, 1:2]
    om = xz[:, 2:3]

    # --- IR amplitudes & 'add' aggregation scaling, all in-kernel -------------
    valid = jnp.where(nanmask[:, 0:1], 0.0, 1.0)                      # ~isnan(x[...,0])
    nm = ((th != 0.0) | (ph != 0.0) | (om != 0.0)).astype(F32)        # (inputs != 0).any(-1)

    # per-jet sums (num_ptcs, #non-zero) broadcast back to branches via a
    # block-of-ones matrix built from iotas (no gather, no reshape).
    row_i = lax.broadcasted_iota(jnp.int32, (B, B), 0)
    col_i = lax.broadcasted_iota(jnp.int32, (B, B), 1)
    same_jet = ((row_i >> NUM_IR) == (col_i >> NUM_IR)).astype(F32)
    seg = jnp.dot(same_jet, jnp.concatenate([valid, nm], axis=1),
                  preferred_element_type=F32)                         # (B, 2)
    nptc = seg[:, 0:1]
    denom = jnp.maximum(seg[:, 1:2], 1.0)   # guard: only differs for all-padded jets
    # features are quadratic in the IR amplitudes, so sqrt(nptc) here == 'add' agg
    w = nm * jnp.sqrt(nptc) * lax.rsqrt(denom)                        # (B, 1)

    # --- per-particle encoding gate G = Rot(phi, theta, omega) @ H ------------
    ang = jnp.concatenate([0.5 * th, 0.5 * (ph + om), 0.5 * (ph - om)], axis=1)
    cosang = jnp.cos(ang)                 # one EUP push instead of three
    sinang = jnp.sin(ang)
    ch, ca, cb = cosang[:, 0:1], cosang[:, 1:2], cosang[:, 2:3]
    sh, sa, sb = sinang[:, 0:1], sinang[:, 1:2], sinang[:, 2:3]
    r00r, r00i = ch * ca, -ch * sa
    r01r, r01i = -sh * cb, -sh * sb
    r10r, r10i = sh * cb, -sh * sb
    r11r, r11i = ch * ca, ch * sa
    g00r = (r00r + r01r) * INV_SQRT2
    g00i = (r00i + r01i) * INV_SQRT2
    g01r = (r00r - r01r) * INV_SQRT2
    g01i = (r00i - r01i) * INV_SQRT2
    g10r = (r10r + r11r) * INV_SQRT2
    g10i = (r10i + r11i) * INV_SQRT2
    g11r = (r10r - r11r) * INV_SQRT2
    g11i = (r10i - r11i) * INV_SQRT2

    # per-wire masks/coefficients (iota-built, reused across re-uploads)
    lane = lax.broadcasted_iota(jnp.int32, (1, D), 1)
    wires = []
    for k in range(NUM_NR):
        m = 1 << (NUM_NR - 1 - k)
        pick0 = (lane & m) == 0                 # (1, D): NR-wire-k bit == 0
        pi0 = pick0.astype(F32)
        pi1 = 1.0 - pi0
        ckr = g00r * pi0 + g11r * pi1           # coeff of old[d]        (B, D)
        cki = g00i * pi0 + g11i * pi1
        csr = g01r * pi0 + g10r * pi1           # coeff of old[d ^ m]
        csi = g01i * pi0 + g10i * pi1
        wires.append((m, pick0, ckr, cki, csr, csi))

    # initial NR state |0...0> for every (jet, particle) branch
    colB = lax.broadcasted_iota(jnp.int32, (B, D), 1)
    s_re = jnp.where(colB == 0, 1.0, 0.0).astype(F32)
    s_im = jnp.zeros((B, D), F32)

    S = None
    for r in range(NUM_REUPLOAD):
        # data encoding: apply G on every NR wire of every branch (VPU + lane rolls)
        for (m, pick0, ckr, cki, csr, csi) in wires:
            sw_re = jnp.where(pick0, _lane_roll(s_re, -m), _lane_roll(s_re, m))
            sw_im = jnp.where(pick0, _lane_roll(s_im, -m), _lane_roll(s_im, m))
            n_re = ckr * s_re - cki * s_im + csr * sw_re - csi * sw_im
            n_im = ckr * s_im + cki * s_re + csr * sw_im + csi * sw_re
            s_re, s_im = n_re, n_im
        # StronglyEntanglingLayers unitary: one real matmul on the packed state
        S = jnp.concatenate([s_re, s_im], axis=1)                     # (B, 2D)
        sel_r = par_ref[SEL_OFF + r * D2: SEL_OFF + (r + 1) * D2, 0:D2]
        S = jnp.dot(S, sel_r, preferred_element_type=F32)
        if r + 1 < NUM_REUPLOAD:
            s_re, s_im = S[:, :D], S[:, D:]

    # aggregate branches:  Phi_n = sum_{b in jet n} w_b * S_b   (packed [re|im])
    row_n = lax.broadcasted_iota(jnp.int32, (N_BATCH, B), 0)
    col_b = lax.broadcasted_iota(jnp.int32, (N_BATCH, B), 1)
    gsel = ((col_b >> NUM_IR) == row_n).astype(F32)                   # (N, B)
    phi_p = jnp.dot(gsel, w * S, preferred_element_type=F32)          # (N, 2D)
    probs = phi_p * phi_p                                             # re^2, im^2

    # {I,X}^IR x Z_k sum + 'add' aggregation + MLP layer 1 fused into one matmul
    zw1 = par_ref[ZW1_OFF:ZW1_OFF + D2, 0:HID]                        # (2D, HID)
    b1 = par_ref[B1_OFF:B1_OFF + 1, 0:HID]                            # (1, HID)
    w2t = par_ref[W2_OFF:W2_OFF + HID, 0:SCORE_DIM]                   # (HID, SCORE_DIM)
    b2 = par_ref[B2_OFF:B2_OFF + 1, 0:SCORE_DIM]                      # (1, SCORE_DIM)
    h = jnp.maximum(jnp.dot(probs, zw1, preferred_element_type=F32) + b1, 0.0)
    out_ref[...] = jnp.dot(h, w2t, preferred_element_type=F32) + b2


# ------------------------------ JAX wrapper ----------------------------------
@jax.jit
def quantum_rot_qcgnn_forward(x, params_slab):
    """x: (N_BATCH, P, 3) float32 with NaN padding for missing particles."""
    xin = x.reshape(B, 3).astype(F32)          # metadata-only; NaNs handled in-kernel
    vmem = pl.BlockSpec(memory_space=pltpu.MemorySpace.VMEM)
    return pl.pallas_call(
        qcgnn_kernel,
        out_shape=jax.ShapeDtypeStruct((N_BATCH, SCORE_DIM), F32),
        in_specs=[vmem, vmem],
        out_specs=vmem,
    )(xin, params_slab)


# --------------------------- numpy reference model ----------------------------
def reference_forward(x_np, qw, w1, b1, w2, b2):
    """Full state-vector simulation of the QCGNN_IX circuit + torch forward."""
    x_np = np.asarray(x_np, np.float64)
    mask = np.isnan(x_np[..., 0])
    xz = np.nan_to_num(x_np, nan=0.0)
    qw = np.asarray(qw, np.float64)
    Us = [sel_unitary(qw[r], NUM_NR) for r in range(NUM_REUPLOAD)]
    zdiag = np.array([[1 - 2 * ((d >> (NUM_NR - 1 - k)) & 1) for k in range(NUM_NR)]
                      for d in range(D)], dtype=np.float64)
    outs = []
    for n in range(N_BATCH):
        non_mask = np.any(xz[n] != 0.0, axis=-1).astype(np.float64)
        cvec = non_mask / np.linalg.norm(non_mask)
        psi = np.zeros((P, D), np.complex128)
        psi[:, 0] = cvec
        for r in range(NUM_REUPLOAD):
            for i in range(P):
                th, ph, om = xz[n, i]
                G = rot_np(ph, th, om) @ H2
                row = psi[i].copy()
                for k in range(NUM_NR):
                    row = embed_1q(G, k, NUM_NR) @ row
                psi[i] = row
            psi = psi @ Us[r].T
        expvals = np.zeros((P, NUM_NR))
        for b in range(P):
            psi_x = psi[np.arange(P) ^ b, :]                 # X^b on IR
            for k in range(NUM_NR):
                Opsi = psi_x * zdiag[:, k][None, :]          # Z on NR wire k
                expvals[b, k] = np.real(np.sum(np.conj(psi) * Opsi))
        feat = expvals.sum(axis=0)                           # sum over {I,X} combos
        feat = feat * np.sum(~mask[n])                       # 'add' aggregation
        h = np.maximum(feat @ np.asarray(w1, np.float64).T + np.asarray(b1, np.float64), 0.0)
        y = h @ np.asarray(w2, np.float64).T + np.asarray(b2, np.float64)
        outs.append(y)
    return np.stack(outs)


# ----------------------------------- main -------------------------------------
if __name__ == "__main__":
    key = jax.random.PRNGKey(0)
    kx, kw, k1, k2, k3, k4 = jax.random.split(key, 6)

    x = jax.random.normal(kx, (N_BATCH, P, 3), dtype=F32)
    x = x.at[1, 3, :].set(jnp.nan)        # NaN-padded (missing) particle

    q_weights = jax.random.uniform(kw, (NUM_REUPLOAD, NUM_LAYERS, NUM_NR, 3),
                                   minval=0.0, maxval=2.0 * np.pi, dtype=F32)
    lim1 = 1.0 / np.sqrt(NUM_NR)
    w1 = jax.random.uniform(k1, (HID, NUM_NR), minval=-lim1, maxval=lim1, dtype=F32)
    b1 = jax.random.uniform(k2, (HID,), minval=-lim1, maxval=lim1, dtype=F32)
    lim2 = 1.0 / np.sqrt(HID)
    w2 = jax.random.uniform(k3, (SCORE_DIM, HID), minval=-lim2, maxval=lim2, dtype=F32)
    b2 = jax.random.uniform(k4, (SCORE_DIM,), minval=-lim2, maxval=lim2, dtype=F32)

    # One-time host-side parameter preparation (hoisted out of the per-call path).
    params_slab = prepare_qcgnn_params(
        np.asarray(q_weights), np.asarray(w1), np.asarray(b1),
        np.asarray(w2), np.asarray(b2))

    y = quantum_rot_qcgnn_forward(x, params_slab)
    y = jax.block_until_ready(y)

    y_ref = reference_forward(np.asarray(x), np.asarray(q_weights),
                              np.asarray(w1), np.asarray(b1),
                              np.asarray(w2), np.asarray(b2))
    assert y.shape == (N_BATCH, SCORE_DIM) and y.dtype == jnp.float32
    np.testing.assert_allclose(np.asarray(y), y_ref, rtol=2e-3, atol=2e-3)
    print("KERNEL_OK")
</pallas_src>

<mosaic_0001>
module attributes {stable_mosaic.version = 11 : i64} {
  func.func @qcgnn_kernel(%arg0: memref<8x3xf32, #tpu.memory_space<vmem>>, %arg1: memref<80x16xf32, #tpu.memory_space<vmem>>, %arg2: memref<2x2xf32, #tpu.memory_space<vmem>>) attributes {dimension_semantics = [], scalar_prefetch = 0 : i64, scratch_operands = 0 : i64, tpu.core_type = #tpu.core_type<tc>} {
    %c0 = arith.constant 0 : index
    %c0_0 = arith.constant 0 : index
    %0 = vector.load %arg0[%c0, %c0_0] : memref<8x3xf32, #tpu.memory_space<vmem>>, vector<8x3xf32>
    %1 = arith.cmpf one, %0, %0 : vector<8x3xf32>
    %cst = arith.constant 0.000000e+00 : f32
    %2 = vector.broadcast %cst : f32 to vector<8x3xf32>
    %3 = arith.select %1, %2, %0 : vector<8x3xi1>, vector<8x3xf32>
    %4 = vector.extract_strided_slice %3 {offsets = [0, 0], sizes = [8, 1], strides = [1, 1]} : vector<8x3xf32> to vector<8x1xf32>
    %5 = vector.extract_strided_slice %3 {offsets = [0, 1], sizes = [8, 1], strides = [1, 1]} : vector<8x3xf32> to vector<8x1xf32>
    %6 = vector.extract_strided_slice %3 {offsets = [0, 2], sizes = [8, 1], strides = [1, 1]} : vector<8x3xf32> to vector<8x1xf32>
    %7 = vector.extract_strided_slice %1 {offsets = [0, 0], sizes = [8, 1], strides = [1, 1]} : vector<8x3xi1> to vector<8x1xi1>
    %cst_1 = arith.constant 0.000000e+00 : f32
    %cst_2 = arith.constant 1.000000e+00 : f32
    %8 = vector.broadcast %cst_1 : f32 to vector<8x1xf32>
    %9 = vector.broadcast %cst_2 : f32 to vector<8x1xf32>
    %10 = arith.select %7, %8, %9 : vector<8x1xi1>, vector<8x1xf32>
    %cst_3 = arith.constant 0.000000e+00 : f32
    %11 = vector.broadcast %cst_3 : f32 to vector<8x1xf32>
    %12 = arith.cmpf one, %4, %11 : vector<8x1xf32>
    %cst_4 = arith.constant 0.000000e+00 : f32
    %13 = vector.broadcast %cst_4 : f32 to vector<8x1xf32>
    %14 = arith.cmpf one, %5, %13 : vector<8x1xf32>
    %15 = arith.ori %12, %14 : vector<8x1xi1>
    %cst_5 = arith.constant 0.000000e+00 : f32
    %16 = vector.broadcast %cst_5 : f32 to vector<8x1xf32>
    %17 = arith.cmpf one, %6, %16 : vector<8x1xf32>
    %18 = arith.ori %15, %17 : vector<8x1xi1>
    %19 = arith.extui %18 : vector<8x1xi1> to vector<8x1xi32>
    %20 = arith.sitofp %19 : vector<8x1xi32> to vector<8x1xf32>
    %21 = tpu.iota {dimensions = array<i32: 0>} : vector<8x8xi32>
    %22 = tpu.iota {dimensions = array<i32: 1>} : vector<8x8xi32>
    %c2_i32 = arith.constant 2 : i32
    %23 = vector.broadcast %c2_i32 : i32 to vector<8x8xi32>
    %24 = arith.shrsi %21, %23 : vector<8x8xi32>
    %c2_i32_6 = arith.constant 2 : i32
    %25 = vector.broadcast %c2_i32_6 : i32 to vector<8x8xi32>
    %26 = arith.shrsi %22, %25 : vector<8x8xi32>
    %27 = arith.cmpi eq, %24, %26 : vector<8x8xi32>
    %28 = arith.extui %27 : vector<8x8xi1> to vector<8x8xi32>
    %29 = arith.sitofp %28 : vector<8x8xi32> to vector<8x8xf32>
    %30 = tpu.concatenate %10, %20 in 1 : vector<8x1xf32>, vector<8x1xf32> -> vector<8x2xf32>
    %cst_7 = arith.constant dense<0.000000e+00> : vector<8x2xf32>
    %31 = tpu.matmul %29, %30, %cst_7 {dimension_numbers = #tpu.dot_dimension_numbers<[1], [0], [0], [1], [0, 0, 1, 1], [], []>} : vector<8x8xf32>, vector<8x2xf32>, vector<8x2xf32> -> vector<8x2xf32>
    %32 = vector.extract_strided_slice %31 {offsets = [0, 0], sizes = [8, 1], strides = [1, 1]} : vector<8x2xf32> to vector<8x1xf32>
    %33 = vector.extract_strided_slice %31 {offsets = [0, 1], sizes = [8, 1], strides = [1, 1]} : vector<8x2xf32> to vector<8x1xf32>
    %cst_8 = arith.constant 1.000000e+00 : f32
    %34 = vector.broadcast %cst_8 : f32 to vector<8x1xf32>
    %35 = arith.maximumf %33, %34 : vector<8x1xf32>
    %36 = math.sqrt %32 : vector<8x1xf32>
    %37 = arith.mulf %20, %36 : vector<8x1xf32>
    %38 = math.rsqrt %35 : vector<8x1xf32>
    %39 = arith.mulf %37, %38 : vector<8x1xf32>
    %cst_9 = arith.constant 5.000000e-01 : f32
    %40 = vector.broadcast %cst_9 : f32 to vector<8x1xf32>
    %41 = arith.mulf %40, %4 : vector<8x1xf32>
    %42 = arith.addf %5, %6 : vector<8x1xf32>
    %cst_10 = arith.constant 5.000000e-01 : f32
    %43 = vector.broadcast %cst_10 : f32 to vector<8x1xf32>
    %44 = arith.mulf %43, %42 : vector<8x1xf32>
    %45 = arith.subf %5, %6 : vector<8x1xf32>
    %cst_11 = arith.constant 5.000000e-01 : f32
    %46 = vector.broadcast %cst_11 : f32 to vector<8x1xf32>
    %47 = arith.mulf %46, %45 : vector<8x1xf32>
    %48 = tpu.concatenate %41, %44, %47 in 1 : vector<8x1xf32>, vector<8x1xf32>, vector<8x1xf32> -> vector<8x3xf32>
    %49 = math.cos %48 : vector<8x3xf32>
    %50 = math.sin %48 : vector<8x3xf32>
    %51 = vector.extract_strided_slice %49 {offsets = [0, 0], sizes = [8, 1], strides = [1, 1]} : vector<8x3xf32> to vector<8x1xf32>
    %52 = vector.extract_strided_slice %49 {offsets = [0, 1], sizes = [8, 1], strides = [1, 1]} : vector<8x3xf32> to vector<8x1xf32>
    %53 = vector.extract_strided_slice %49 {offsets = [0, 2], sizes = [8, 1], strides = [1, 1]} : vector<8x3xf32> to vector<8x1xf32>
    %54 = vector.extract_strided_slice %50 {offsets = [0, 0], sizes = [8, 1], strides = [1, 1]} : vector<8x3xf32> to vector<8x1xf32>
    %55 = vector.extract_strided_slice %50 {offsets = [0, 1], sizes = [8, 1], strides = [1, 1]} : vector<8x3xf32> to vector<8x1xf32>
    %56 = vector.extract_strided_slice %50 {offsets = [0, 2], sizes = [8, 1], strides = [1, 1]} : vector<8x3xf32> to vector<8x1xf32>
    %57 = arith.mulf %51, %52 : vector<8x1xf32>
    %cst_12 = arith.constant 0.000000e+00 : f32
    %58 = vector.broadcast %cst_12 : f32 to vector<8x1xf32>
    %59 = arith.subf %58, %51 : vector<8x1xf32>
    %60 = arith.mulf %59, %55 : vector<8x1xf32>
    %cst_13 = arith.constant 0.000000e+00 : f32
    %61 = vector.broadcast %cst_13 : f32 to vector<8x1xf32>
    %62 = arith.subf %61, %54 : vector<8x1xf32>
    %63 = arith.mulf %62, %53 : vector<8x1xf32>
    %cst_14 = arith.constant 0.000000e+00 : f32
    %64 = vector.broadcast %cst_14 : f32 to vector<8x1xf32>
    %65 = arith.subf %64, %54 : vector<8x1xf32>
    %66 = arith.mulf %65, %56 : vector<8x1xf32>
    %67 = arith.mulf %54, %53 : vector<8x1xf32>
    %cst_15 = arith.constant 0.000000e+00 : f32
    %68 = vector.broadcast %cst_15 : f32 to vector<8x1xf32>
    %69 = arith.subf %68, %54 : vector<8x1xf32>
    %70 = arith.mulf %69, %56 : vector<8x1xf32>
    %71 = arith.mulf %51, %52 : vector<8x1xf32>
    %72 = arith.mulf %51, %55 : vector<8x1xf32>
    %73 = arith.addf %57, %63 : vector<8x1xf32>
    %cst_16 = arith.constant 0.707106769 : f32
    %74 = vector.broadcast %cst_16 : f32 to vector<8x1xf32>
    %75 = arith.mulf %73, %74 : vector<8x1xf32>
    %76 = arith.addf %60, %66 : vector<8x1xf32>
    %cst_17 = arith.constant 0.707106769 : f32
    %77 = vector.broadcast %cst_17 : f32 to vector<8x1xf32>
    %78 = arith.mulf %76, %77 : vector<8x1xf32>
    %79 = arith.subf %57, %63 : vector<8x1xf32>
    %cst_18 = arith.constant 0.707106769 : f32
    %80 = vector.broadcast %cst_18 : f32 to vector<8x1xf32>
    %81 = arith.mulf %79, %80 : vector<8x1xf32>
    %82 = arith.subf %60, %66 : vector<8x1xf32>
    %cst_19 = arith.constant 0.707106769 : f32
    %83 = vector.broadcast %cst_19 : f32 to vector<8x1xf32>
    %84 = arith.mulf %82, %83 : vector<8x1xf32>
    %85 = arith.addf %67, %71 : vector<8x1xf32>
    %cst_20 = arith.constant 0.707106769 : f32
    %86 = vector.broadcast %cst_20 : f32 to vector<8x1xf32>
    %87 = arith.mulf %85, %86 : vector<8x1xf32>
    %88 = arith.addf %70, %72 : vector<8x1xf32>
    %cst_21 = arith.constant 0.707106769 : f32
    %89 = vector.broadcast %cst_21 : f32 to vector<8x1xf32>
    %90 = arith.mulf %88, %89 : vector<8x1xf32>
    %91 = arith.subf %67, %71 : vector<8x1xf32>
    %cst_22 = arith.constant 0.707106769 : f32
    %92 = vector.broadcast %cst_22 : f32 to vector<8x1xf32>
    %93 = arith.mulf %91, %92 : vector<8x1xf32>
    %94 = arith.subf %70, %72 : vector<8x1xf32>
    %cst_23 = arith.constant 0.707106769 : f32
    %95 = vector.broadcast %cst_23 : f32 to vector<8x1xf32>
    %96 = arith.mulf %94, %95 : vector<8x1xf32>
    %97 = tpu.iota {dimensions = array<i32: 1>} : vector<1x8xi32>
    %c4_i32 = arith.constant 4 : i32
    %98 = vector.broadcast %c4_i32 : i32 to vector<1x8xi32>
    %99 = arith.andi %97, %98 : vector<1x8xi32>
    %c0_i32 = arith.constant 0 : i32
    %100 = vector.broadcast %c0_i32 : i32 to vector<1x8xi32>
    %101 = arith.cmpi eq, %99, %100 : vector<1x8xi32>
    %102 = arith.extui %101 : vector<1x8xi1> to vector<1x8xi32>
    %103 = arith.sitofp %102 : vector<1x8xi32> to vector<1x8xf32>
    %cst_24 = arith.constant 1.000000e+00 : f32
    %104 = vector.broadcast %cst_24 : f32 to vector<1x8xf32>
    %105 = arith.subf %104, %103 : vector<1x8xf32>
    %106 = vector.broadcast %75 : vector<8x1xf32> to vector<8x8xf32>
    %107 = vector.broadcast %103 : vector<1x8xf32> to vector<8x8xf32>
    %108 = arith.mulf %106, %107 : vector<8x8xf32>
    %109 = vector.broadcast %93 : vector<8x1xf32> to vector<8x8xf32>
    %110 = vector.broadcast %105 : vector<1x8xf32> to vector<8x8xf32>
    %111 = arith.mulf %109, %110 : vector<8x8xf32>
    %112 = arith.addf %108, %111 : vector<8x8xf32>
    %113 = vector.broadcast %78 : vector<8x1xf32> to vector<8x8xf32>
    %114 = vector.broadcast %103 : vector<1x8xf32> to vector<8x8xf32>
    %115 = arith.mulf %113, %114 : vector<8x8xf32>
    %116 = vector.broadcast %96 : vector<8x1xf32> to vector<8x8xf32>
    %117 = vector.broadcast %105 : vector<1x8xf32> to vector<8x8xf32>
    %118 = arith.mulf %116, %117 : vector<8x8xf32>
    %119 = arith.addf %115, %118 : vector<8x8xf32>
    %120 = vector.broadcast %81 : vector<8x1xf32> to vector<8x8xf32>
    %121 = vector.broadcast %103 : vector<1x8xf32> to vector<8x8xf32>
    %122 = arith.mulf %120, %121 : vector<8x8xf32>
    %123 = vector.broadcast %87 : vector<8x1xf32> to vector<8x8xf32>
    %124 = vector.broadcast %105 : vector<1x8xf32> to vector<8x8xf32>
    %125 = arith.mulf %123, %124 : vector<8x8xf32>
    %126 = arith.addf %122, %125 : vector<8x8xf32>
    %127 = vector.broadcast %84 : vector<8x1xf32> to vector<8x8xf32>
    %128 = vector.broadcast %103 : vector<1x8xf32> to vector<8x8xf32>
    %129 = arith.mulf %127, %128 : vector<8x8xf32>
    %130 = vector.broadcast %90 : vector<8x1xf32> to vector<8x8xf32>
    %131 = vector.broadcast %105 : vector<1x8xf32> to vector<8x8xf32>
    %132 = arith.mulf %130, %131 : vector<8x8xf32>
    %133 = arith.addf %129, %132 : vector<8x8xf32>
    %c2_i32_25 = arith.constant 2 : i32
    %134 = vector.broadcast %c2_i32_25 : i32 to vector<1x8xi32>
    %135 = arith.andi %97, %134 : vector<1x8xi32>
    %c0_i32_26 = arith.constant 0 : i32
    %136 = vector.broadcast %c0_i32_26 : i32 to vector<1x8xi32>
    %137 = arith.cmpi eq, %135, %136 : vector<1x8xi32>
    %138 = arith.extui %137 : vector<1x8xi1> to vector<1x8xi32>
    %139 = arith.sitofp %138 : vector<1x8xi32> to vector<1x8xf32>
    %cst_27 = arith.constant 1.000000e+00 : f32
    %140 = vector.broadcast %cst_27 : f32 to vector<1x8xf32>
    %141 = arith.subf %140, %139 : vector<1x8xf32>
    %142 = vector.broadcast %75 : vector<8x1xf32> to vector<8x8xf32>
    %143 = vector.broadcast %139 : vector<1x8xf32> to vector<8x8xf32>
    %144 = arith.mulf %142, %143 : vector<8x8xf32>
    %145 = vector.broadcast %93 : vector<8x1xf32> to vector<8x8xf32>
    %146 = vector.broadcast %141 : vector<1x8xf32> to vector<8x8xf32>
    %147 = arith.mulf %145, %146 : vector<8x8xf32>
    %148 = arith.addf %144, %147 : vector<8x8xf32>
    %149 = vector.broadcast %78 : vector<8x1xf32> to vector<8x8xf32>
    %150 = vector.broadcast %139 : vector<1x8xf32> to vector<8x8xf32>
    %151 = arith.mulf %149, %150 : vector<8x8xf32>
    %152 = vector.broadcast %96 : vector<8x1xf32> to vector<8x8xf32>
    %153 = vector.broadcast %141 : vector<1x8xf32> to vector<8x8xf32>
    %154 = arith.mulf %152, %153 : vector<8x8xf32>
    %155 = arith.addf %151, %154 : vector<8x8xf32>
    %156 = vector.broadcast %81 : vector<8x1xf32> to vector<8x8xf32>
    %157 = vector.broadcast %139 : vector<1x8xf32> to vector<8x8xf32>
    %158 = arith.mulf %156, %157 : vector<8x8xf32>
    %159 = vector.broadcast %87 : vector<8x1xf32> to vector<8x8xf32>
    %160 = vector.broadcast %141 : vector<1x8xf32> to vector<8x8xf32>
    %161 = arith.mulf %159, %160 : vector<8x8xf32>
    %162 = arith.addf %158, %161 : vector<8x8xf32>
    %163 = vector.broadcast %84 : vector<8x1xf32> to vector<8x8xf32>
    %164 = vector.broadcast %139 : vector<1x8xf32> to vector<8x8xf32>
    %165 = arith.mulf %163, %164 : vector<8x8xf32>
    %166 = vector.broadcast %90 : vector<8x1xf32> to vector<8x8xf32>
    %167 = vector.broadcast %141 : vector<1x8xf32> to vector<8x8xf32>
    %168 = arith.mulf %166, %167 : vector<8x8xf32>
    %169 = arith.addf %165, %168 : vector<8x8xf32>
    %c1_i32 = arith.constant 1 : i32
    %170 = vector.broadcast %c1_i32 : i32 to vector<1x8xi32>
    %171 = arith.andi %97, %170 : vector<1x8xi32>
    %c0_i32_28 = arith.constant 0 : i32
    %172 = vector.broadcast %c0_i32_28 : i32 to vector<1x8xi32>
    %173 = arith.cmpi eq, %171, %172 : vector<1x8xi32>
    %174 = arith.extui %173 : vector<1x8xi1> to vector<1x8xi32>
    %175 = arith.sitofp %174 : vector<1x8xi32> to vector<1x8xf32>
    %cst_29 = arith.constant 1.000000e+00 : f32
    %176 = vector.broadcast %cst_29 : f32 to vector<1x8xf32>
    %177 = arith.subf %176, %175 : vector<1x8xf32>
    %178 = vector.broadcast %75 : vector<8x1xf32> to vector<8x8xf32>
    %179 = vector.broadcast %175 : vector<1x8xf32> to vector<8x8xf32>
    %180 = arith.mulf %178, %179 : vector<8x8xf32>
    %181 = vector.broadcast %93 : vector<8x1xf32> to vector<8x8xf32>
    %182 = vector.broadcast %177 : vector<1x8xf32> to vector<8x8xf32>
    %183 = arith.mulf %181, %182 : vector<8x8xf32>
    %184 = arith.addf %180, %183 : vector<8x8xf32>
    %185 = vector.broadcast %78 : vector<8x1xf32> to vector<8x8xf32>
    %186 = vector.broadcast %175 : vector<1x8xf32> to vector<8x8xf32>
    %187 = arith.mulf %185, %186 : vector<8x8xf32>
    %188 = vector.broadcast %96 : vector<8x1xf32> to vector<8x8xf32>
    %189 = vector.broadcast %177 : vector<1x8xf32> to vector<8x8xf32>
    %190 = arith.mulf %188, %189 : vector<8x8xf32>
    %191 = arith.addf %187, %190 : vector<8x8xf32>
    %192 = vector.broadcast %81 : vector<8x1xf32> to vector<8x8xf32>
    %193 = vector.broadcast %175 : vector<1x8xf32> to vector<8x8xf32>
    %194 = arith.mulf %192, %193 : vector<8x8xf32>
    %195 = vector.broadcast %87 : vector<8x1xf32> to vector<8x8xf32>
    %196 = vector.broadcast %177 : vector<1x8xf32> to vector<8x8xf32>
    %197 = arith.mulf %195, %196 : vector<8x8xf32>
    %198 = arith.addf %194, %197 : vector<8x8xf32>
    %199 = vector.broadcast %84 : vector<8x1xf32> to vector<8x8xf32>
    %200 = vector.broadcast %175 : vector<1x8xf32> to vector<8x8xf32>
    %201 = arith.mulf %199, %200 : vector<8x8xf32>
    %202 = vector.broadcast %90 : vector<8x1xf32> to vector<8x8xf32>
    %203 = vector.broadcast %177 : vector<1x8xf32> to vector<8x8xf32>
    %204 = arith.mulf %202, %203 : vector<8x8xf32>
    %205 = arith.addf %201, %204 : vector<8x8xf32>
    %206 = tpu.iota {dimensions = array<i32: 1>} : vector<8x8xi32>
    %c0_i32_30 = arith.constant 0 : i32
    %207 = vector.broadcast %c0_i32_30 : i32 to vector<8x8xi32>
    %208 = arith.cmpi eq, %206, %207 : vector<8x8xi32>
    %cst_31 = arith.constant 1.000000e+00 : f32
    %cst_32 = arith.constant 0.000000e+00 : f32
    %209 = vector.broadcast %cst_31 : f32 to vector<8x8xf32>
    %210 = vector.broadcast %cst_32 : f32 to vector<8x8xf32>
    %211 = arith.select %208, %209, %210 : vector<8x8xi1>, vector<8x8xf32>
    %cst_33 = arith.constant 0.000000e+00 : f32
    %212 = vector.broadcast %cst_33 : f32 to vector<8x8xf32>
    %213 = vector.extract_strided_slice %211 {offsets = [0, 4], sizes = [8, 4], strides = [1, 1]} : vector<8x8xf32> to vector<8x4xf32>
    %214 = vector.extract_strided_slice %211 {offsets = [0, 0], sizes = [8, 4], strides = [1, 1]} : vector<8x8xf32> to vector<8x4xf32>
    %215 = tpu.concatenate %213, %214 in 1 : vector<8x4xf32>, vector<8x4xf32> -> vector<8x8xf32>
    %216 = vector.extract_strided_slice %211 {offsets = [0, 4], sizes = [8, 4], strides = [1, 1]} : vector<8x8xf32> to vector<8x4xf32>
    %217 = vector.extract_strided_slice %211 {offsets = [0, 0], sizes = [8, 4], strides = [1, 1]} : vector<8x8xf32> to vector<8x4xf32>
    %218 = tpu.concatenate %216, %217 in 1 : vector<8x4xf32>, vector<8x4xf32> -> vector<8x8xf32>
    %219 = vector.shape_cast %101 : vector<1x8xi1> to vector<1x8xi1>
    %220 = vector.broadcast %219 : vector<1x8xi1> to vector<8x8xi1>
    %221 = arith.select %220, %215, %218 : vector<8x8xi1>, vector<8x8xf32>
    %222 = vector.extract_strided_slice %212 {offsets = [0, 4], sizes = [8, 4], strides = [1, 1]} : vector<8x8xf32> to vector<8x4xf32>
    %223 = vector.extract_strided_slice %212 {offsets = [0, 0], sizes = [8, 4], strides = [1, 1]} : vector<8x8xf32> to vector<8x4xf32>
    %224 = tpu.concatenate %222, %223 in 1 : vector<8x4xf32>, vector<8x4xf32> -> vector<8x8xf32>
    %225 = vector.extract_strided_slice %212 {offsets = [0, 4], sizes = [8, 4], strides = [1, 1]} : vector<8x8xf32> to vector<8x4xf32>
    %226 = vector.extract_strided_slice %212 {offsets = [0, 0], sizes = [8, 4], strides = [1, 1]} : vector<8x8xf32> to vector<8x4xf32>
    %227 = tpu.concatenate %225, %226 in 1 : vector<8x4xf32>, vector<8x4xf32> -> vector<8x8xf32>
    %228 = vector.shape_cast %101 : vector<1x8xi1> to vector<1x8xi1>
    %229 = vector.broadcast %228 : vector<1x8xi1> to vector<8x8xi1>
    %230 = arith.select %229, %224, %227 : vector<8x8xi1>, vector<8x8xf32>
    %231 = arith.mulf %112, %211 : vector<8x8xf32>
    %232 = arith.mulf %119, %212 : vector<8x8xf32>
    %233 = arith.subf %231, %232 : vector<8x8xf32>
    %234 = arith.mulf %126, %221 : vector<8x8xf32>
    %235 = arith.addf %233, %234 : vector<8x8xf32>
    %236 = arith.mulf %133, %230 : vector<8x8xf32>
    %237 = arith.subf %235, %236 : vector<8x8xf32>
    %238 = arith.mulf %112, %212 : vector<8x8xf32>
    %239 = arith.mulf %119, %211 : vector<8x8xf32>
    %240 = arith.addf %238, %239 : vector<8x8xf32>
    %241 = arith.mulf %126, %230 : vector<8x8xf32>
    %242 = arith.addf %240, %241 : vector<8x8xf32>
    %243 = arith.mulf %133, %221 : vector<8x8xf32>
    %244 = arith.addf %242, %243 : vector<8x8xf32>
    %245 = vector.extract_strided_slice %237 {offsets = [0, 2], sizes = [8, 6], strides = [1, 1]} : vector<8x8xf32> to vector<8x6xf32>
    %246 = vector.extract_strided_slice %237 {offsets = [0, 0], sizes = [8, 2], strides = [1, 1]} : vector<8x8xf32> to vector<8x2xf32>
    %247 = tpu.concatenate %245, %246 in 1 : vector<8x6xf32>, vector<8x2xf32> -> vector<8x8xf32>
    %248 = vector.extract_strided_slice %237 {offsets = [0, 6], sizes = [8, 2], strides = [1, 1]} : vector<8x8xf32> to vector<8x2xf32>
    %249 = vector.extract_strided_slice %237 {offsets = [0, 0], sizes = [8, 6], strides = [1, 1]} : vector<8x8xf32> to vector<8x6xf32>
    %250 = tpu.concatenate %248, %249 in 1 : vector<8x2xf32>, vector<8x6xf32> -> vector<8x8xf32>
    %251 = vector.shape_cast %137 : vector<1x8xi1> to vector<1x8xi1>
    %252 = vector.broadcast %251 : vector<1x8xi1> to vector<8x8xi1>
    %253 = arith.select %252, %247, %250 : vector<8x8xi1>, vector<8x8xf32>
    %254 = vector.extract_strided_slice %244 {offsets = [0, 2], sizes = [8, 6], strides = [1, 1]} : vector<8x8xf32> to vector<8x6xf32>
    %255 = vector.extract_strided_slice %244 {offsets = [0, 0], sizes = [8, 2], strides = [1, 1]} : vector<8x8xf32> to vector<8x2xf32>
    %256 = tpu.concatenate %254, %255 in 1 : vector<8x6xf32>, vector<8x2xf32> -> vector<8x8xf32>
    %257 = vector.extract_strided_slice %244 {offsets = [0, 6], sizes = [8, 2], strides = [1, 1]} : vector<8x8xf32> to vector<8x2xf32>
    %258 = vector.extract_strided_slice %244 {offsets = [0, 0], sizes = [8, 6], strides = [1, 1]} : vector<8x8xf32> to vector<8x6xf32>
    %259 = tpu.concatenate %257, %258 in 1 : vector<8x2xf32>, vector<8x6xf32> -> vector<8x8xf32>
    %260 = vector.shape_cast %137 : vector<1x8xi1> to vector<1x8xi1>
    %261 = vector.broadcast %260 : vector<1x8xi1> to vector<8x8xi1>
    %262 = arith.select %261, %256, %259 : vector<8x8xi1>, vector<8x8xf32>
    %263 = arith.mulf %148, %237 : vector<8x8xf32>
    %264 = arith.mulf %155, %244 : vector<8x8xf32>
    %265 = arith.subf %263, %264 : vector<8x8xf32>
    %266 = arith.mulf %162, %253 : vector<8x8xf32>
    %267 = arith.addf %265, %266 : vector<8x8xf32>
    %268 = arith.mulf %169, %262 : vector<8x8xf32>
    %269 = arith.subf %267, %268 : vector<8x8xf32>
    %270 = arith.mulf %148, %244 : vector<8x8xf32>
    %271 = arith.mulf %155, %237 : vector<8x8xf32>
    %272 = arith.addf %270, %271 : vector<8x8xf32>
    %273 = arith.mulf %162, %262 : vector<8x8xf32>
    %274 = arith.addf %272, %273 : vector<8x8xf32>
    %275 = arith.mulf %169, %253 : vector<8x8xf32>
    %276 = arith.addf %274, %275 : vector<8x8xf32>
    %277 = vector.extract_strided_slice %269 {offsets = [0, 1], sizes = [8, 7], strides = [1, 1]} : vector<8x8xf32> to vector<8x7xf32>
    %278 = vector.extract_strided_slice %269 {offsets = [0, 0], sizes = [8, 1], strides = [1, 1]} : vector<8x8xf32> to vector<8x1xf32>
    %279 = tpu.concatenate %277, %278 in 1 : vector<8x7xf32>, vector<8x1xf32> -> vector<8x8xf32>
    %280 = vector.extract_strided_slice %269 {offsets = [0, 7], sizes = [8, 1], strides = [1, 1]} : vector<8x8xf32> to vector<8x1xf32>
    %281 = vector.extract_strided_slice %269 {offsets = [0, 0], sizes = [8, 7], strides = [1, 1]} : vector<8x8xf32> to vector<8x7xf32>
    %282 = tpu.concatenate %280, %281 in 1 : vector<8x1xf32>, vector<8x7xf32> -> vector<8x8xf32>
    %283 = vector.shape_cast %173 : vector<1x8xi1> to vector<1x8xi1>
    %284 = vector.broadcast %283 : vector<1x8xi1> to vector<8x8xi1>
    %285 = arith.select %284, %279, %282 : vector<8x8xi1>, vector<8x8xf32>
    %286 = vector.extract_strided_slice %276 {offsets = [0, 1], sizes = [8, 7], strides = [1, 1]} : vector<8x8xf32> to vector<8x7xf32>
    %287 = vector.extract_strided_slice %276 {offsets = [0, 0], sizes = [8, 1], strides = [1, 1]} : vector<8x8xf32> to vector<8x1xf32>
    %288 = tpu.concatenate %286, %287 in 1 : vector<8x7xf32>, vector<8x1xf32> -> vector<8x8xf32>
    %289 = vector.extract_strided_slice %276 {offsets = [0, 7], sizes = [8, 1], strides = [1, 1]} : vector<8x8xf32> to vector<8x1xf32>
    %290 = vector.extract_strided_slice %276 {offsets = [0, 0], sizes = [8, 7], strides = [1, 1]} : vector<8x8xf32> to vector<8x7xf32>
    %291 = tpu.concatenate %289, %290 in 1 : vector<8x1xf32>, vector<8x7xf32> -> vector<8x8xf32>
    %292 = vector.shape_cast %173 : vector<1x8xi1> to vector<1x8xi1>
    %293 = vector.broadcast %292 : vector<1x8xi1> to vector<8x8xi1>
    %294 = arith.select %293, %288, %291 : vector<8x8xi1>, vector<8x8xf32>
    %295 = arith.mulf %184, %269 : vector<8x8xf32>
    %296 = arith.mulf %191, %276 : vector<8x8xf32>
    %297 = arith.subf %295, %296 : vector<8x8xf32>
    %298 = arith.mulf %198, %285 : vector<8x8xf32>
    %299 = arith.addf %297, %298 : vector<8x8xf32>
    %300 = arith.mulf %205, %294 : vector<8x8xf32>
    %301 = arith.subf %299, %300 : vector<8x8xf32>
    %302 = arith.mulf %184, %276 : vector<8x8xf32>
    %303 = arith.mulf %191, %269 : vector<8x8xf32>
    %304 = arith.addf %302, %303 : vector<8x8xf32>
    %305 = arith.mulf %198, %294 : vector<8x8xf32>
    %306 = arith.addf %304, %305 : vector<8x8xf32>
    %307 = arith.mulf %205, %285 : vector<8x8xf32>
    %308 = arith.addf %306, %307 : vector<8x8xf32>
    %309 = tpu.concatenate %301, %308 in 1 : vector<8x8xf32>, vector<8x8xf32> -> vector<8x16xf32>
    %c0_34 = arith.constant 0 : index
    %c0_35 = arith.constant 0 : index
    %310 = vector.load %arg1[%c0_34, %c0_35] : memref<80x16xf32, #tpu.memory_space<vmem>>, vector<16x16xf32>
    %cst_36 = arith.constant dense<0.000000e+00> : vector<8x16xf32>
    %311 = tpu.matmul %309, %310, %cst_36 {dimension_numbers = #tpu.dot_dimension_numbers<[1], [0], [0], [1], [0, 0, 1, 1], [], []>} : vector<8x16xf32>, vector<16x16xf32>, vector<8x16xf32> -> vector<8x16xf32>
    %312 = vector.extract_strided_slice %311 {offsets = [0, 0], sizes = [8, 8], strides = [1, 1]} : vector<8x16xf32> to vector<8x8xf32>
    %313 = vector.extract_strided_slice %311 {offsets = [0, 8], sizes = [8, 8], strides = [1, 1]} : vector<8x16xf32> to vector<8x8xf32>
    %314 = vector.extract_strided_slice %312 {offsets = [0, 4], sizes = [8, 4], strides = [1, 1]} : vector<8x8xf32> to vector<8x4xf32>
    %315 = vector.extract_strided_slice %312 {offsets = [0, 0], sizes = [8, 4], strides = [1, 1]} : vector<8x8xf32> to vector<8x4xf32>
    %316 = tpu.concatenate %314, %315 in 1 : vector<8x4xf32>, vector<8x4xf32> -> vector<8x8xf32>
    %317 = vector.extract_strided_slice %312 {offsets = [0, 4], sizes = [8, 4], strides = [1, 1]} : vector<8x8xf32> to vector<8x4xf32>
    %318 = vector.extract_strided_slice %312 {offsets = [0, 0], sizes = [8, 4], strides = [1, 1]} : vector<8x8xf32> to vector<8x4xf32>
    %319 = tpu.concatenate %317, %318 in 1 : vector<8x4xf32>, vector<8x4xf32> -> vector<8x8xf32>
    %320 = vector.shape_cast %101 : vector<1x8xi1> to vector<1x8xi1>
    %321 = vector.broadcast %320 : vector<1x8xi1> to vector<8x8xi1>
    %322 = arith.select %321, %316, %319 : vector<8x8xi1>, vector<8x8xf32>
    %323 = vector.extract_strided_slice %313 {offsets = [0, 4], sizes = [8, 4], strides = [1, 1]} : vector<8x8xf32> to vector<8x4xf32>
    %324 = vector.extract_strided_slice %313 {offsets = [0, 0], sizes = [8, 4], strides = [1, 1]} : vector<8x8xf32> to vector<8x4xf32>
    %325 = tpu.concatenate %323, %324 in 1 : vector<8x4xf32>, vector<8x4xf32> -> vector<8x8xf32>
    %326 = vector.extract_strided_slice %313 {offsets = [0, 4], sizes = [8, 4], strides = [1, 1]} : vector<8x8xf32> to vector<8x4xf32>
    %327 = vector.extract_strided_slice %313 {offsets = [0, 0], sizes = [8, 4], strides = [1, 1]} : vector<8x8xf32> to vector<8x4xf32>
    %328 = tpu.concatenate %326, %327 in 1 : vector<8x4xf32>, vector<8x4xf32> -> vector<8x8xf32>
    %329 = vector.shape_cast %101 : vector<1x8xi1> to vector<1x8xi1>
    %330 = vector.broadcast %329 : vector<1x8xi1> to vector<8x8xi1>
    %331 = arith.select %330, %325, %328 : vector<8x8xi1>, vector<8x8xf32>
    %332 = arith.mulf %112, %312 : vector<8x8xf32>
    %333 = arith.mulf %119, %313 : vector<8x8xf32>
    %334 = arith.subf %332, %333 : vector<8x8xf32>
    %335 = arith.mulf %126, %322 : vector<8x8xf32>
    %336 = arith.addf %334, %335 : vector<8x8xf32>
    %337 = arith.mulf %133, %331 : vector<8x8xf32>
    %338 = arith.subf %336, %337 : vector<8x8xf32>
    %339 = arith.mulf %112, %313 : vector<8x8xf32>
    %340 = arith.mulf %119, %312 : vector<8x8xf32>
    %341 = arith.addf %339, %340 : vector<8x8xf32>
    %342 = arith.mulf %126, %331 : vector<8x8xf32>
    %343 = arith.addf %341, %342 : vector<8x8xf32>
    %344 = arith.mulf %133, %322 : vector<8x8xf32>
    %345 = arith.addf %343, %344 : vector<8x8xf32>
    %346 = vector.extract_strided_slice %338 {offsets = [0, 2], sizes = [8, 6], strides = [1, 1]} : vector<8x8xf32> to vector<8x6xf32>
    %347 = vector.extract_strided_slice %338 {offsets = [0, 0], sizes = [8, 2], strides = [1, 1]} : vector<8x8xf32> to vector<8x2xf32>
    %348 = tpu.concatenate %346, %347 in 1 : vector<8x6xf32>, vector<8x2xf32> -> vector<8x8xf32>
    %349 = vector.extract_strided_slice %338 {offsets = [0, 6], sizes = [8, 2], strides = [1, 1]} : vector<8x8xf32> to vector<8x2xf32>
    %350 = vector.extract_strided_slice %338 {offsets = [0, 0], sizes = [8, 6], strides = [1, 1]} : vector<8x8xf32> to vector<8x6xf32>
    %351 = tpu.concatenate %349, %350 in 1 : vector<8x2xf32>, vector<8x6xf32> -> vector<8x8xf32>
    %352 = vector.shape_cast %137 : vector<1x8xi1> to vector<1x8xi1>
    %353 = vector.broadcast %352 : vector<1x8xi1> to vector<8x8xi1>
    %354 = arith.select %353, %348, %351 : vector<8x8xi1>, vector<8x8xf32>
    %355 = vector.extract_strided_slice %345 {offsets = [0, 2], sizes = [8, 6], strides = [1, 1]} : vector<8x8xf32> to vector<8x6xf32>
    %356 = vector.extract_strided_slice %345 {offsets = [0, 0], sizes = [8, 2], strides = [1, 1]} : vector<8x8xf32> to vector<8x2xf32>
    %357 = tpu.concatenate %355, %356 in 1 : vector<8x6xf32>, vector<8x2xf32> -> vector<8x8xf32>
    %358 = vector.extract_strided_slice %345 {offsets = [0, 6], sizes = [8, 2], strides = [1, 1]} : vector<8x8xf32> to vector<8x2xf32>
    %359 = vector.extract_strided_slice %345 {offsets = [0, 0], sizes = [8, 6], strides = [1, 1]} : vector<8x8xf32> to vector<8x6xf32>
    %360 = tpu.concatenate %358, %359 in 1 : vector<8x2xf32>, vector<8x6xf32> -> vector<8x8xf32>
    %361 = vector.shape_cast %137 : vector<1x8xi1> to vector<1x8xi1>
    %362 = vector.broadcast %361 : vector<1x8xi1> to vector<8x8xi1>
    %363 = arith.select %362, %357, %360 : vector<8x8xi1>, vector<8x8xf32>
    %364 = arith.mulf %148, %338 : vector<8x8xf32>
    %365 = arith.mulf %155, %345 : vector<8x8xf32>
    %366 = arith.subf %364, %365 : vector<8x8xf32>
    %367 = arith.mulf %162, %354 : vector<8x8xf32>
    %368 = arith.addf %366, %367 : vector<8x8xf32>
    %369 = arith.mulf %169, %363 : vector<8x8xf32>
    %370 = arith.subf %368, %369 : vector<8x8xf32>
    %371 = arith.mulf %148, %345 : vector<8x8xf32>
    %372 = arith.mulf %155, %338 : vector<8x8xf32>
    %373 = arith.addf %371, %372 : vector<8x8xf32>
    %374 = arith.mulf %162, %363 : vector<8x8xf32>
    %375 = arith.addf %373, %374 : vector<8x8xf32>
    %376 = arith.mulf %169, %354 : vector<8x8xf32>
    %377 = arith.addf %375, %376 : vector<8x8xf32>
    %378 = vector.extract_strided_slice %370 {offsets = [0, 1], sizes = [8, 7], strides = [1, 1]} : vector<8x8xf32> to vector<8x7xf32>
    %379 = vector.extract_strided_slice %370 {offsets = [0, 0], sizes = [8, 1], strides = [1, 1]} : vector<8x8xf32> to vector<8x1xf32>
    %380 = tpu.concatenate %378, %379 in 1 : vector<8x7xf32>, vector<8x1xf32> -> vector<8x8xf32>
    %381 = vector.extract_strided_slice %370 {offsets = [0, 7], sizes = [8, 1], strides = [1, 1]} : vector<8x8xf32> to vector<8x1xf32>
    %382 = vector.extract_strided_slice %370 {offsets = [0, 0], sizes = [8, 7], strides = [1, 1]} : vector<8x8xf32> to vector<8x7xf32>
    %383 = tpu.concatenate %381, %382 in 1 : vector<8x1xf32>, vector<8x7xf32> -> vector<8x8xf32>
    %384 = vector.shape_cast %173 : vector<1x8xi1> to vector<1x8xi1>
    %385 = vector.broadcast %384 : vector<1x8xi1> to vector<8x8xi1>
    %386 = arith.select %385, %380, %383 : vector<8x8xi1>, vector<8x8xf32>
    %387 = vector.extract_strided_slice %377 {offsets = [0, 1], sizes = [8, 7], strides = [1, 1]} : vector<8x8xf32> to vector<8x7xf32>
    %388 = vector.extract_strided_slice %377 {offsets = [0, 0], sizes = [8, 1], strides = [1, 1]} : vector<8x8xf32> to vector<8x1xf32>
    %389 = tpu.concatenate %387, %388 in 1 : vector<8x7xf32>, vector<8x1xf32> -> vector<8x8xf32>
    %390 = vector.extract_strided_slice %377 {offsets = [0, 7], sizes = [8, 1], strides = [1, 1]} : vector<8x8xf32> to vector<8x1xf32>
    %391 = vector.extract_strided_slice %377 {offsets = [0, 0], sizes = [8, 7], strides = [1, 1]} : vector<8x8xf32> to vector<8x7xf32>
    %392 = tpu.concatenate %390, %391 in 1 : vector<8x1xf32>, vector<8x7xf32> -> vector<8x8xf32>
    %393 = vector.shape_cast %173 : vector<1x8xi1> to vector<1x8xi1>
    %394 = vector.broadcast %393 : vector<1x8xi1> to vector<8x8xi1>
    %395 = arith.select %394, %389, %392 : vector<8x8xi1>, vector<8x8xf32>
    %396 = arith.mulf %184, %370 : vector<8x8xf32>
    %397 = arith.mulf %191, %377 : vector<8x8xf32>
    %398 = arith.subf %396, %397 : vector<8x8xf32>
    %399 = arith.mulf %198, %386 : vector<8x8xf32>
    %400 = arith.addf %398, %399 : vector<8x8xf32>
    %401 = arith.mulf %205, %395 : vector<8x8xf32>
    %402 = arith.subf %400, %401 : vector<8x8xf32>
    %403 = arith.mulf %184, %377 : vector<8x8xf32>
    %404 = arith.mulf %191, %370 : vector<8x8xf32>
    %405 = arith.addf %403, %404 : vector<8x8xf32>
    %406 = arith.mulf %198, %395 : vector<8x8xf32>
    %407 = arith.addf %405, %406 : vector<8x8xf32>
    %408 = arith.mulf %205, %386 : vector<8x8xf32>
    %409 = arith.addf %407, %408 : vector<8x8xf32>
    %410 = tpu.concatenate %402, %409 in 1 : vector<8x8xf32>, vector<8x8xf32> -> vector<8x16xf32>
    %c16 = arith.constant 16 : index
    %c0_37 = arith.constant 0 : index
    %411 = vector.load %arg1[%c16, %c0_37] : memref<80x16xf32, #tpu.memory_space<vmem>>, vector<16x16xf32>
    %cst_38 = arith.constant dense<0.000000e+00> : vector<8x16xf32>
    %412 = tpu.matmul %410, %411, %cst_38 {dimension_numbers = #tpu.dot_dimension_numbers<[1], [0], [0], [1], [0, 0, 1, 1], [], []>} : vector<8x16xf32>, vector<16x16xf32>, vector<8x16xf32> -> vector<8x16xf32>
    %413 = tpu.iota {dimensions = array<i32: 0>} : vector<2x8xi32>
    %414 = tpu.iota {dimensions = array<i32: 1>} : vector<2x8xi32>
    %c2_i32_39 = arith.constant 2 : i32
    %415 = vector.broadcast %c2_i32_39 : i32 to vector<2x8xi32>
    %416 = arith.shrsi %414, %415 : vector<2x8xi32>
    %417 = arith.cmpi eq, %416, %413 : vector<2x8xi32>
    %418 = arith.extui %417 : vector<2x8xi1> to vector<2x8xi32>
    %419 = arith.sitofp %418 : vector<2x8xi32> to vector<2x8xf32>
    %420 = vector.broadcast %39 : vector<8x1xf32> to vector<8x16xf32>
    %421 = arith.mulf %420, %412 : vector<8x16xf32>
    %cst_40 = arith.constant dense<0.000000e+00> : vector<2x16xf32>
    %422 = tpu.matmul %419, %421, %cst_40 {dimension_numbers = #tpu.dot_dimension_numbers<[1], [0], [0], [1], [0, 0, 1, 1], [], []>} : vector<2x8xf32>, vector<8x16xf32>, vector<2x16xf32> -> vector<2x16xf32>
    %423 = arith.mulf %422, %422 : vector<2x16xf32>
    %c32 = arith.constant 32 : index
    %c0_41 = arith.constant 0 : index
    %424 = vector.load %arg1[%c32, %c0_41] : memref<80x16xf32, #tpu.memory_space<vmem>>, vector<16x16xf32>
    %c48 = arith.constant 48 : index
    %c0_42 = arith.constant 0 : index
    %425 = vector.load %arg1[%c48, %c0_42] : memref<80x16xf32, #tpu.memory_space<vmem>>, vector<1x16xf32>
    %c56 = arith.constant 56 : index
    %c0_43 = arith.constant 0 : index
    %426 = vector.load %arg1[%c56, %c0_43] : memref<80x16xf32, #tpu.memory_space<vmem>>, vector<16x2xf32>
    %c72 = arith.constant 72 : index
    %c0_44 = arith.constant 0 : index
    %427 = vector.load %arg1[%c72, %c0_44] : memref<80x16xf32, #tpu.memory_space<vmem>>, vector<1x2xf32>
    %cst_45 = arith.constant dense<0.000000e+00> : vector<2x16xf32>
    %428 = tpu.matmul %423, %424, %cst_45 {dimension_numbers = #tpu.dot_dimension_numbers<[1], [0], [0], [1], [0, 0, 1, 1], [], []>} : vector<2x16xf32>, vector<16x16xf32>, vector<2x16xf32> -> vector<2x16xf32>
    %429 = vector.broadcast %425 : vector<1x16xf32> to vector<2x16xf32>
    %430 = arith.addf %428, %429 : vector<2x16xf32>
    %cst_46 = arith.constant 0.000000e+00 : f32
    %431 = vector.broadcast %cst_46 : f32 to vector<2x16xf32>
    %432 = arith.maximumf %430, %431 : vector<2x16xf32>
    %cst_47 = arith.constant dense<0.000000e+00> : vector<2x2xf32>
    %433 = tpu.matmul %432, %426, %cst_47 {dimension_numbers = #tpu.dot_dimension_numbers<[1], [0], [0], [1], [0, 0, 1, 1], [], []>} : vector<2x16xf32>, vector<16x2xf32>, vector<2x2xf32> -> vector<2x2xf32>
    %434 = vector.broadcast %427 : vector<1x2xf32> to vector<2x2xf32>
    %435 = arith.addf %433, %434 : vector<2x2xf32>
    %c0_48 = arith.constant 0 : index
    %c0_49 = arith.constant 0 : index
    %436 = vector.load %arg2[%c0_48, %c0_49] : memref<2x2xf32, #tpu.memory_space<vmem>>, vector<2x2xf32>
    tpu.vector_store %arg2[%c0_48, %c0_49], %435 {strides = array<i32>} : memref<2x2xf32, #tpu.memory_space<vmem>>, vector<2x2xf32>,
    return
  }
}

</mosaic_0001>

<llo_original>
// kernel: quantum_rot_qcgnn_forward.1
$region0: #{quantum_rot_qcgnn_forward.1}
  #allocation0 [shape = 'u32[]', space=smem, size = 0x4, offset = 0x4, fixed_abs, tag = 'smem constant byte address 0x4 - core index']
  #allocation1 [shape = 'u32[144,128]{1,0:T(1,128)}', space=vmem, size = 0x12000, scoped, tag = 'internal scratch']
  %s0 = inlined_call_operand.vmem [shape: f32[8,3], index: 0, kind: input, shape index: {}]
  %s1 = inlined_call_operand.vmem [shape: f32[80,16], index: 1, kind: input, shape index: {}]
  %s2 = inlined_call_operand.hbm [shape: f32[2,2], index: 2, kind: output, shape index: {}]
  %s3 = sld [smem:[#allocation0]]
  $region18: #{quantum_rot_qcgnn_forward.1} parent=0
    _
  %s5 = ssub.s32 1, %s3
  %s6 = scalar_select 0, %s5, %s3
  $region1: #{quantum_rot_qcgnn_forward.1} parent=0
    #allocation2 [shape = 'u8[1024]{0}', space=vmem, size = 0x400, scoped, tag = 'output window, operand 0, single buffered']
    #allocation3 [shape = 's32[1]{0}', space=sflag, size = 0x4, scoped, tag = 'scoped memory for quantum_rot_qcgnn_forward.1']
    %7 = vsyncpa [#allocation3], 0
    // Predicated region
    $region2: #{quantum_rot_qcgnn_forward.1} parent=1 // pred_check
      _
    $region3: #{quantum_rot_qcgnn_forward.1} parent=1 // pred_check_branch
      %9 = sbr.rel (0) target = $region5
    $region4: #{quantum_rot_qcgnn_forward.1} parent=1 // pred_region
      _
    $region5: #{quantum_rot_qcgnn_forward.1} parent=1 // pred_fallthru
      _
    // Predicated region
    $region6: #{quantum_rot_qcgnn_forward.1} parent=1 // pred_check
      _
    $region7: #{quantum_rot_qcgnn_forward.1} parent=1 // pred_check_branch
      %11 = sbr.rel (0) target = $region9
    $region8: #{quantum_rot_qcgnn_forward.1} parent=1 // pred_region
      _
    $region9: #{quantum_rot_qcgnn_forward.1} parent=1 // pred_fallthru
      _
    %v12 = vld [vmem:[%s0] sm:$0xff]
    %vm13 = vcmp.ne.f32.partialorder %v12, %v12
    %v14 = vsel %vm13, 0.0, %v12
    %v15 = vsel %vm13, 0.0, 1.0
    %vm16 = vcmp.ne.f32.partialorder %v14, 0.0
    %v17 = vsel %vm16, 1, 0
    %18 = vrot.lane.b32.xlu0 %v17, 127
    %v19 = vpop.permute.xlu0 %18
    %vm20 = vcmp.ne.s32.totalorder %v19, 0
    %vm21 = vmor %vm16, %vm20
    %22 = vrot.lane.b32.xlu0 %v17, 126
    %v23 = vpop.permute.xlu0 %22
    %vm24 = vcmp.ne.s32.totalorder %v23, 0
    %vm25 = vmor %vm21, %vm24
    %v26 = vsel %vm25, 1, 0
    %v27 = vcvt.s32.f32 %v26
    %v28 = vlaneseq
    %v29 = vshrl.u32 %v28, 7
    %v30 = vlaneseq
    %v31 = vand.u32 %v30, 127
    %v32 = vshra.s32 %v29, 2
    %v33 = vshra.s32 %v31, 2
    %vm34 = vcmp.eq.s32.totalorder %v32, %v33
    %v35 = vsel %vm34, 1, 0
    %v36 = vcvt.s32.f32 %v35
    %38 = vrot.lane.b32.xlu0 %v27, 1
    %v39 = vpop.permute.xlu0 %38
    %vm41 = vcmask 7168
    %v42 = vsel %vm41, %v15, %v39
    %vm43 = vcmask 64512
    %v45 = vsel %vm43, %v36, 0
    %47 = vmatprep.subr.mxu0 0.0
    %48 = vmatpush1.msra.mxu0 %v42
    %49 = vmatprep.subr.mxu0 0.0
    %50 = vmatpush1.msra.mxu0 0.0
    %51 = vmatprep.subr.mxu0 0.0
    %52 = vmatpush1.msra.mxu0 0.0
    %53 = vmatprep.subr.mxu0 0.0
    %54 = vmatpush1.msra.mxu0 0.0
    %55 = vmatprep.subr.mxu0 0.0
    %56 = vmatpush1.msra.mxu0 0.0
    %57 = vmatprep.subr.mxu0 0.0
    %58 = vmatpush1.msra.mxu0 0.0
    %59 = vmatprep.subr.mxu0 0.0
    %60 = vmatpush1.msra.mxu0 0.0
    %61 = vmatprep.subr.mxu0 0.0
    %62 = vmatpush1.msra.mxu0 0.0
    %63 = vmatprep.subr.mxu0 0.0
    %64 = vmatpush1.msra.mxu0 0.0
    %65 = vmatprep.subr.mxu0 0.0
    %66 = vmatpush1.msra.mxu0 0.0
    %67 = vmatprep.subr.mxu0 0.0
    %68 = vmatpush1.msra.mxu0 0.0
    %69 = vmatprep.subr.mxu0 0.0
    %70 = vmatpush1.msra.mxu0 0.0
    %71 = vmatprep.subr.mxu0 0.0
    %72 = vmatpush1.msra.mxu0 0.0
    %73 = vmatprep.subr.mxu0 0.0
    %74 = vmatpush1.msra.mxu0 0.0
    %75 = vmatprep.subr.mxu0 0.0
    %76 = vmatpush1.msra.mxu0 0.0
    %77 = vmatprep.subr.mxu0 0.0
    %78 = vmatpush1.msra.mxu0 0.0
    %79 = vmatprep.subr.mxu0 0.0
    %80 = vmatpush1.msra.mxu0 0.0
    %81 = vmatprep.subr.mxu0 0.0
    %82 = vmatpush1.msra.mxu0 0.0
    %83 = vmatprep.subr.mxu0 0.0
    %84 = vmatpush1.msra.mxu0 0.0
    %85 = vmatprep.subr.mxu0 0.0
    %86 = vmatpush1.msra.mxu0 0.0
    %87 = vmatprep.subr.mxu0 0.0
    %88 = vmatpush1.msra.mxu0 0.0
    %89 = vmatprep.subr.mxu0 0.0
    %90 = vmatpush1.msra.mxu0 0.0
    %91 = vmatprep.subr.mxu0 0.0
    %92 = vmatpush1.msra.mxu0 0.0
    %93 = vmatprep.subr.mxu0 0.0
    %94 = vmatpush1.msra.mxu0 0.0
    %95 = vmatprep.subr.mxu0 0.0
    %96 = vmatpush1.msra.mxu0 0.0
    %97 = vmatprep.subr.mxu0 0.0
    %98 = vmatpush1.msra.mxu0 0.0
    %99 = vmatprep.subr.mxu0 0.0
    %100 = vmatpush1.msra.mxu0 0.0
    %101 = vmatprep.subr.mxu0 0.0
    %102 = vmatpush1.msra.mxu0 0.0
    %103 = vmatprep.subr.mxu0 0.0
    %104 = vmatpush1.msra.mxu0 0.0
    %105 = vmatprep.subr.mxu0 0.0
    %106 = vmatpush1.msra.mxu0 0.0
    %107 = vmatprep.subr.mxu0 0.0
    %108 = vmatpush1.msra.mxu0 0.0
    %109 = vmatprep.subr.mxu0 0.0
    %110 = vmatpush1.msra.mxu0 0.0
    %111 = vmatprep.mubr.f32.mxu0 0.0
    %112 = vmatmul.mubr.f32.gmra.mrb[0].mxu0 %v45
    %v113 = vpop.f32.mrb[0].mxu0
    %v114 = vadd.f32 0.0, %v113
    %v115 = vpop.f32.mrb[0].mxu0
    %116 = vdwg.mxu0
    %v117 = vmax.f32 %v114, 1.0
    %v118 = vrsqrt.pop %v114
    %v119 = vmul.f32 %v114, %v118
    %vm120 = vcmp.eq.f32.partialorder %v114, inf
    %v121 = vsel %vm120, %v114, %v119
    %vm122 = vcmp.eq.f32.partialorder %v114, 0.0
    %v123 = vand.u32 %v114, 2147483648
    %v124 = vsel %vm122, %v123, %v121
    %v125 = vmul.f32 %v27, %v124
    %v126 = vrsqrt.pop %v117
    %128 = vrot.lane.b32.xlu0 %v126, 127
    %v129 = vpop.permute.xlu0 %128
    %v131 = vmul.f32 %v125, %v129
    %v132 = vmul.f32 %v14, 0.5
    %134 = vrot.lane.b32.xlu0 %v14, 127
    %v135 = vpop.permute.xlu0 %134
    %v137 = vadd.f32 %v14, %v135
    %v138 = vmul.f32 %v137, 0.5
    %v139 = vsub.f32 %v14, %v135
    %v140 = vmul.f32 %v139, 0.5
    %142 = vrot.lane.b32.xlu0 %v140, 1
    %v143 = vpop.permute.xlu0 %142
    %v145 = vsel %vm41, %v132, %v138
    %vm146 = vcmask 15360
    %v147 = vsel %vm146, %v145, %v143
    %v148 = vand.u32 2147483647, %v147
    %vm149 = vcmp.le.f32.partialorder %v148, 0.7853982
    %vm150 = vcmp.lt.s32.totalorder %v147, 0
    %v151 = vand.u32 %v147, 2139095040
    %v152 = vshrl.u32 %v151, 23
    %v153 = vsub.s32 %v152, 127
    %v154 = vand.u32 2147483647, %v147
    %v155 = vand.u32 %v154, 8388607
    %v156 = vor.u32 %v155, 8388608
    %v157 = vsub.s32 0, %v156
    %v158 = vadd.s32 %v153, 1
    %vm159 = vcmp.gt.s32.totalorder %v158, 0
    %v160 = vsel %vm159, %v158, 0
    %v161 = vshrl.u32 %v160, 5
    %v162 = vand.u32 %v160, 31
    %v163 = vsub.s32 32, %v162
    %v164 = vshrl.u32 683565275, %v163
    %v165 = vshll.u32 683565275, %v162
    %v166 = vshrl.u32 2475754826, %v163
    %v167 = vor.u32 %v165, %v166
    %v168 = vshll.u32 2475754826, %v162
    %v169 = vshrl.u32 2131351028, %v163
    %v170 = vor.u32 %v168, %v169
    %v171 = vshll.u32 2131351028, %v162
    %v172 = vshrl.u32 2102212464, %v163
    %v173 = vor.u32 %v171, %v172
    %v174 = vshll.u32 2102212464, %v162
    %v175 = vshrl.u32 920167782, %v163
    %v176 = vor.u32 %v174, %v175
    %v177 = vshll.u32 920167782, %v162
    %v178 = vshrl.u32 1326507024, %v163
    %v179 = vor.u32 %v177, %v178
    %vm180 = vcmp.lt.s32.totalorder %v161, 1
    %vm181 = vcmp.lt.s32.totalorder %v161, 2
    %vm182 = vcmp.lt.s32.totalorder %v161, 3
    %vm183 = vcmp.lt.s32.totalorder %v161, 4
    %v184 = vsel %vm180, %v164, %v167
    %v185 = vsel %vm183, %v173, 2102212464
    %v186 = vsel %vm182, %v170, %v185
    %v187 = vsel %vm181, %v184, %v186
    %v188 = vsel %vm180, %v167, %v170
    %v189 = vsel %vm183, %v176, 920167782
    %v190 = vsel %vm182, %v173, %v189
    %v191 = vsel %vm181, %v188, %v190
    %v192 = vsel %vm180, %v170, %v173
    %v193 = vsel %vm183, %v179, 1326507024
    %v194 = vsel %vm182, %v176, %v193
    %v195 = vsel %vm181, %v192, %v194
    %v196 = vshll.u32 %v156, 8
    %v197 = vmul.u32.u64.compose %v196, %v195
    %v198 = vextract.low.u32 %v197
    %v199 = vextract.high.u32 %v197
    %v200 = vmul.u32.u64.compose %v196, %v191
    %v201 = vextract.low.u32 %v200
    %v202 = vextract.high.u32 %v200
    %v203 = vmul.u32 %v196, %v187
    %v204 = vadd.s32 %v199, %v201
    %vm205 = vc.u32 %v199, %v201
    %v206 = vadd.s32 %v202, 1
    %v207 = vsel %vm205, %v206, %v202
    %v208 = vadd.s32 %v203, %v207
    %v209 = vadd.s32 %v208, 536870912
    %v210 = vshrl.u32 %v209, 30
    %v211 = vshll.u32 %v210, 30
    %v212 = vsub.s32 %v208, %v211
    %vm213 = vcmp.lt.s32.totalorder %v212, 0
    %v214 = vsub.s32 0, %v212
    %v215 = vsel %vm213, %v214, %v212
    %v216 = vclz %v215
    %v217 = vsub.s32 %v216, 2
    %vm218 = vcmp.gt.s32.totalorder 0, %v217
    %v219 = vsel %vm218, 0, %v217
    %v220 = vsub.s32 32, %v219
    %v221 = vshll.u32 %v212, %v219
    %v222 = vshrl.u32 %v204, %v220
    %v223 = vor.u32 %v221, %v222
    %v224 = vsub.s32 4294967266, %v219
    %v225 = vadd.s32 %v224, 127
    %v226 = vshll.u32 %v225, 23
    %v227 = vor.u32 4788187, %v226
    %v228 = vand.u32 2147483647, %v227
    %v230 = vcvt.s32.f32 %v223
    %v231 = vmul.f32 %v230, %v228
    %v232 = vxor.u32 %v231, 2147483648
    %v233 = vsel %vm150, %v232, %v231
    %v234 = vsub.s32 4, %v210
    %v235 = vsel %vm150, %v234, %v210
    %v236 = vsel %vm149, %v147, %v233
    %v237 = vsel %vm149, 0, %v235
    %v238 = vcosq.f32.pop %v236
    %v239 = vsinq.f32.pop %v236
    %vm240 = vweird.f32 %v147
    %v241 = vand.u32 %v237, 3
    %vm242 = vcmp.lt.s32.totalorder %v241, 2
    %vm243 = vcmp.eq.s32.totalorder %v241, 0
    %v244 = vxor.u32 %v239, 2147483648
    %v245 = vsel %vm243, %v238, %v244
    %vm246 = vcmp.eq.s32.totalorder %v241, 2
    %v247 = vxor.u32 %v238, 2147483648
    %v248 = vsel %vm246, %v247, %v239
    %v249 = vsel %vm242, %v245, %v248
    %v250 = vsel %vm240, nan, %v249
    %v251 = vand.u32 2147483647, %v147
    %vm252 = vcmp.le.f32.partialorder %v251, 0.7853982
    %vm253 = vcmp.lt.s32.totalorder %v147, 0
    %v254 = vand.u32 %v147, 2139095040
    %v255 = vshrl.u32 %v254, 23
    %v256 = vsub.s32 %v255, 127
    %v257 = vand.u32 2147483647, %v147
    %v258 = vand.u32 %v257, 8388607
    %v259 = vor.u32 %v258, 8388608
    %v260 = vsub.s32 0, %v259
    %v261 = vadd.s32 %v256, 1
    %vm262 = vcmp.gt.s32.totalorder %v261, 0
    %v263 = vsel %vm262, %v261, 0
    %v264 = vshrl.u32 %v263, 5
    %v265 = vand.u32 %v263, 31
    %v266 = vsub.s32 32, %v265
    %v267 = vshrl.u32 683565275, %v266
    %v268 = vshll.u32 683565275, %v265
    %v269 = vshrl.u32 2475754826, %v266
    %v270 = vor.u32 %v268, %v269
    %v271 = vshll.u32 2475754826, %v265
    %v272 = vshrl.u32 2131351028, %v266
    %v273 = vor.u32 %v271, %v272
    %v274 = vshll.u32 2131351028, %v265
    %v275 = vshrl.u32 2102212464, %v266
    %v276 = vor.u32 %v274, %v275
    %v277 = vshll.u32 2102212464, %v265
    %v278 = vshrl.u32 920167782, %v266
    %v279 = vor.u32 %v277, %v278
    %v280 = vshll.u32 920167782, %v265
    %v281 = vshrl.u32 1326507024, %v266
    %v282 = vor.u32 %v280, %v281
    %vm283 = vcmp.lt.s32.totalorder %v264, 1
    %vm284 = vcmp.lt.s32.totalorder %v264, 2
    %vm285 = vcmp.lt.s32.totalorder %v264, 3
    %vm286 = vcmp.lt.s32.totalorder %v264, 4
    %v287 = vsel %vm283, %v267, %v270
    %v288 = vsel %vm286, %v276, 2102212464
    %v289 = vsel %vm285, %v273, %v288
    %v290 = vsel %vm284, %v287, %v289
    %v291 = vsel %vm283, %v270, %v273
    %v292 = vsel %vm286, %v279, 920167782
    %v293 = vsel %vm285, %v276, %v292
    %v294 = vsel %vm284, %v291, %v293
    %v295 = vsel %vm283, %v273, %v276
    %v296 = vsel %vm286, %v282, 1326507024
    %v297 = vsel %vm285, %v279, %v296
    %v298 = vsel %vm284, %v295, %v297
    %v299 = vshll.u32 %v259, 8
    %v300 = vmul.u32.u64.compose %v299, %v298
    %v301 = vextract.low.u32 %v300
    %v302 = vextract.high.u32 %v300
    %v303 = vmul.u32.u64.compose %v299, %v294
    %v304 = vextract.low.u32 %v303
    %v305 = vextract.high.u32 %v303
    %v306 = vmul.u32 %v299, %v290
    %v307 = vadd.s32 %v302, %v304
    %vm308 = vc.u32 %v302, %v304
    %v309 = vadd.s32 %v305, 1
    %v310 = vsel %vm308, %v309, %v305
    %v311 = vadd.s32 %v306, %v310
    %v312 = vadd.s32 %v311, 536870912
    %v313 = vshrl.u32 %v312, 30
    %v314 = vshll.u32 %v313, 30
    %v315 = vsub.s32 %v311, %v314
    %vm316 = vcmp.lt.s32.totalorder %v315, 0
    %v317 = vsub.s32 0, %v315
    %v318 = vsel %vm316, %v317, %v315
    %v319 = vclz %v318
    %v320 = vsub.s32 %v319, 2
    %vm321 = vcmp.gt.s32.totalorder 0, %v320
    %v322 = vsel %vm321, 0, %v320
    %v323 = vsub.s32 32, %v322
    %v324 = vshll.u32 %v315, %v322
    %v325 = vshrl.u32 %v307, %v323
    %v326 = vor.u32 %v324, %v325
    %v327 = vsub.s32 4294967266, %v322
    %v328 = vadd.s32 %v327, 127
    %v329 = vshll.u32 %v328, 23
    %v330 = vor.u32 4788187, %v329
    %v331 = vand.u32 2147483647, %v330
    %v333 = vcvt.s32.f32 %v326
    %v334 = vmul.f32 %v333, %v331
    %v335 = vxor.u32 %v334, 2147483648
    %v336 = vsel %vm253, %v335, %v334
    %v337 = vsub.s32 4, %v313
    %v338 = vsel %vm253, %v337, %v313
    %v339 = vsel %vm252, %v147, %v336
    %v340 = vsel %vm252, 0, %v338
    %v341 = vcosq.f32.pop %v339
    %v342 = vsinq.f32.pop %v339
    %vm343 = vweird.f32 %v147
    %v344 = vadd.s32 %v340, 3
    %v345 = vand.u32 %v344, 3
    %vm346 = vcmp.lt.s32.totalorder %v345, 2
    %vm347 = vcmp.eq.s32.totalorder %v345, 0
    %v348 = vxor.u32 %v342, 2147483648
    %v349 = vsel %vm347, %v341, %v348
    %vm350 = vcmp.eq.s32.totalorder %v345, 2
    %v351 = vxor.u32 %v341, 2147483648
    %v352 = vsel %vm350, %v351, %v342
    %v353 = vsel %vm346, %v349, %v352
    %v354 = vsel %vm343, nan, %v353
    %356 = vrot.lane.b32.xlu0 %v250, 127
    %v357 = vpop.permute.xlu0 %356
    %v359 = vmul.f32 %v250, %v357
    %v360 = vsub.f32 0.0, %v250
    %362 = vrot.lane.b32.xlu0 %v354, 127
    %v363 = vpop.permute.xlu0 %362
    %v365 = vmul.f32 %v360, %v363
    %v366 = vsub.f32 0.0, %v354
    %367 = vrot.lane.b32.xlu0 %v250, 126
    %v368 = vpop.permute.xlu0 %367
    %v370 = vmul.f32 %v366, %v368
    %371 = vrot.lane.b32.xlu0 %v354, 126
    %v372 = vpop.permute.xlu0 %371
    %v374 = vmul.f32 %v366, %v372
    %v375 = vmul.f32 %v354, %v368
    %v376 = vmul.f32 %v250, %v363
    %v377 = vadd.f32 %v359, %v370
    %v378 = vmul.f32 %v377, 0.70710677
    %v379 = vadd.f32 %v365, %v374
    %v380 = vmul.f32 %v379, 0.70710677
    %v381 = vsub.f32 %v359, %v370
    %v382 = vmul.f32 %v381, 0.70710677
    %v383 = vsub.f32 %v365, %v374
    %v384 = vmul.f32 %v383, 0.70710677
    %v385 = vadd.f32 %v375, %v359
    %v386 = vmul.f32 %v385, 0.70710677
    %v387 = vadd.f32 %v374, %v376
    %v388 = vmul.f32 %v387, 0.70710677
    %v389 = vsub.f32 %v375, %v359
    %v390 = vmul.f32 %v389, 0.70710677
    %v391 = vsub.f32 %v374, %v376
    %v392 = vmul.f32 %v391, 0.70710677
    %v393 = vand.u32 %v31, 4
    %vm394 = vcmp.eq.s32.totalorder %v393, 0
    %v395 = vsel %vm394, 1, 0
    %v396 = vcvt.s32.f32 %v395
    %v397 = vsub.f32 1.0, %v396
    %399 = vset.pattern.permute.xlu0 0
    %400 = vperm.xlu0 %399, %v378
    %v401 = vpop.permute.xlu0 %400
    %v403 = vmul.f32 %v401, %v396
    %405 = vset.pattern.permute.xlu0 0
    %406 = vperm.xlu0 %405, %v390
    %v407 = vpop.permute.xlu0 %406
    %v409 = vmul.f32 %v407, %v397
    %v410 = vadd.f32 %v403, %v409
    %412 = vset.pattern.permute.xlu0 0
    %413 = vperm.xlu0 %412, %v380
    %v414 = vpop.permute.xlu0 %413
    %v416 = vmul.f32 %v414, %v396
    %418 = vset.pattern.permute.xlu0 0
    %419 = vperm.xlu0 %418, %v392
    %v420 = vpop.permute.xlu0 %419
    %v422 = vmul.f32 %v420, %v397
    %v423 = vadd.f32 %v416, %v422
    %425 = vset.pattern.permute.xlu0 0
    %426 = vperm.xlu0 %425, %v382
    %v427 = vpop.permute.xlu0 %426
    %v429 = vmul.f32 %v427, %v396
    %431 = vset.pattern.permute.xlu0 0
    %432 = vperm.xlu0 %431, %v386
    %v433 = vpop.permute.xlu0 %432
    %v435 = vmul.f32 %v433, %v397
    %v436 = vadd.f32 %v429, %v435
    %438 = vset.pattern.permute.xlu0 0
    %439 = vperm.xlu0 %438, %v384
    %v440 = vpop.permute.xlu0 %439
    %v442 = vmul.f32 %v440, %v396
    %444 = vset.pattern.permute.xlu0 0
    %445 = vperm.xlu0 %444, %v388
    %v446 = vpop.permute.xlu0 %445
    %v448 = vmul.f32 %v446, %v397
    %v449 = vadd.f32 %v442, %v448
    %v450 = vand.u32 %v31, 2
    %vm451 = vcmp.eq.s32.totalorder %v450, 0
    %v452 = vsel %vm451, 1, 0
    %v453 = vcvt.s32.f32 %v452
    %v454 = vsub.f32 1.0, %v453
    %v455 = vmul.f32 %v401, %v453
    %v456 = vmul.f32 %v407, %v454
    %v457 = vadd.f32 %v455, %v456
    %v458 = vmul.f32 %v414, %v453
    %v459 = vmul.f32 %v420, %v454
    %v460 = vadd.f32 %v458, %v459
    %v461 = vmul.f32 %v427, %v453
    %v462 = vmul.f32 %v433, %v454
    %v463 = vadd.f32 %v461, %v462
    %v464 = vmul.f32 %v440, %v453
    %v465 = vmul.f32 %v446, %v454
    %v466 = vadd.f32 %v464, %v465
    %v467 = vand.u32 %v31, 1
    %vm468 = vcmp.eq.s32.totalorder %v467, 0
    %v469 = vsel %vm468, 1, 0
    %v470 = vcvt.s32.f32 %v469
    %v471 = vsub.f32 1.0, %v470
    %v472 = vmul.f32 %v401, %v470
    %v473 = vmul.f32 %v407, %v471
    %v474 = vadd.f32 %v472, %v473
    %v475 = vmul.f32 %v414, %v470
    %v476 = vmul.f32 %v420, %v471
    %v477 = vadd.f32 %v475, %v476
    %v478 = vmul.f32 %v427, %v470
    %v479 = vmul.f32 %v433, %v471
    %v480 = vadd.f32 %v478, %v479
    %v481 = vmul.f32 %v440, %v470
    %v482 = vmul.f32 %v446, %v471
    %v483 = vadd.f32 %v481, %v482
    %vm484 = vcmp.eq.s32.totalorder %v31, 0
    %v485 = vsel %vm484, 1.0, 0.0
    %487 = vrot.lane.b32.xlu0 %v485, 124
    %v488 = vpop.permute.xlu0 %487
    %490 = vrot.lane.b32.xlu0 %v485, 4
    %v491 = vpop.permute.xlu0 %490
    %vm493 = vcmask 31744
    %v494 = vsel %vm493, %v488, %v491
    %v495 = vmul.f32 %v410, %v485
    %v496 = vmul.f32 %v423, 0.0
    %v497 = vsub.f32 %v495, %v496
    %v498 = vmul.f32 %v436, %v494
    %v499 = vadd.f32 %v497, %v498
    %v500 = vmul.f32 %v449, 0.0
    %v501 = vsub.f32 %v499, %v500
    %v502 = vmul.f32 %v410, 0.0
    %v503 = vmul.f32 %v423, %v485
    %v504 = vadd.f32 %v502, %v503
    %v505 = vmul.f32 %v436, 0.0
    %v506 = vadd.f32 %v504, %v505
    %v507 = vmul.f32 %v449, %v494
    %v508 = vadd.f32 %v506, %v507
    %510 = vrot.lane.b32.xlu0 %v501, 126
    %v511 = vpop.permute.xlu0 %510
    %513 = vrot.lane.b32.xlu0 %v501, 6
    %v514 = vpop.permute.xlu0 %513
    %vm516 = vcmask 48128
    %v517 = vsel %vm516, %v511, %v514
    %518 = vrot.lane.b32.xlu0 %v501, 122
    %v519 = vpop.permute.xlu0 %518
    %521 = vrot.lane.b32.xlu0 %v501, 2
    %v522 = vpop.permute.xlu0 %521
    %v524 = vsel %vm146, %v519, %v522
    %vm525 = vcmp.eq.s32.totalorder %v452, 1
    %v526 = vsel %vm525, %v517, %v524
    %528 = vrot.lane.b32.xlu0 %v508, 126
    %v529 = vpop.permute.xlu0 %528
    %531 = vrot.lane.b32.xlu0 %v508, 6
    %v532 = vpop.permute.xlu0 %531
    %v534 = vsel %vm516, %v529, %v532
    %535 = vrot.lane.b32.xlu0 %v508, 122
    %v536 = vpop.permute.xlu0 %535
    %538 = vrot.lane.b32.xlu0 %v508, 2
    %v539 = vpop.permute.xlu0 %538
    %v541 = vsel %vm146, %v536, %v539
    %v542 = vsel %vm525, %v534, %v541
    %v543 = vmul.f32 %v457, %v501
    %v544 = vmul.f32 %v460, %v508
    %v545 = vsub.f32 %v543, %v544
    %v546 = vmul.f32 %v463, %v526
    %v547 = vadd.f32 %v545, %v546
    %v548 = vmul.f32 %v466, %v542
    %v549 = vsub.f32 %v547, %v548
    %v550 = vmul.f32 %v457, %v508
    %v551 = vmul.f32 %v460, %v501
    %v552 = vadd.f32 %v550, %v551
    %v553 = vmul.f32 %v463, %v542
    %v554 = vadd.f32 %v552, %v553
    %v555 = vmul.f32 %v466, %v526
    %v556 = vadd.f32 %v554, %v555
    %558 = vrot.lane.b32.xlu0 %v549, 127
    %v559 = vpop.permute.xlu0 %558
    %561 = vrot.lane.b32.xlu0 %v549, 7
    %v562 = vpop.permute.xlu0 %561
    %vm564 = vcmask 56320
    %v565 = vsel %vm564, %v559, %v562
    %566 = vrot.lane.b32.xlu0 %v549, 121
    %v567 = vpop.permute.xlu0 %566
    %569 = vrot.lane.b32.xlu0 %v549, 1
    %v570 = vpop.permute.xlu0 %569
    %v572 = vsel %vm41, %v567, %v570
    %vm573 = vcmp.eq.s32.totalorder %v469, 1
    %v574 = vsel %vm573, %v565, %v572
    %576 = vrot.lane.b32.xlu0 %v556, 127
    %v577 = vpop.permute.xlu0 %576
    %579 = vrot.lane.b32.xlu0 %v556, 7
    %v580 = vpop.permute.xlu0 %579
    %v582 = vsel %vm564, %v577, %v580
    %583 = vrot.lane.b32.xlu0 %v556, 121
    %v584 = vpop.permute.xlu0 %583
    %586 = vrot.lane.b32.xlu0 %v556, 1
    %v587 = vpop.permute.xlu0 %586
    %v589 = vsel %vm41, %v584, %v587
    %v590 = vsel %vm573, %v582, %v589
    %v591 = vmul.f32 %v474, %v549
    %v592 = vmul.f32 %v477, %v556
    %v593 = vsub.f32 %v591, %v592
    %v594 = vmul.f32 %v480, %v574
    %v595 = vadd.f32 %v593, %v594
    %v596 = vmul.f32 %v483, %v590
    %v597 = vsub.f32 %v595, %v596
    %v598 = vmul.f32 %v474, %v556
    %v599 = vmul.f32 %v477, %v549
    %v600 = vadd.f32 %v598, %v599
    %v601 = vmul.f32 %v480, %v590
    %v602 = vadd.f32 %v600, %v601
    %v603 = vmul.f32 %v483, %v574
    %v604 = vadd.f32 %v602, %v603
    %606 = vrot.lane.b32.xlu0 %v604, 8
    %v607 = vpop.permute.xlu0 %606
    %v609 = vsel %vm43, %v597, %v607
    %v610 = vld [vmem:[%s1] sm:$0xff]
    %v611 = vld [vmem:[%s1 + $0x8] sm:$0xff]
    %vm612 = vcmask 130048
    %v614 = vsel %vm612, %v609, 0
    %616 = vmatprep.subr.mxu0 0.0
    %617 = vmatpush1.msra.mxu0 %v610
    %618 = vmatprep.subr.mxu0 0.0
    %619 = vmatpush1.msra.mxu0 %v611
    %620 = vmatprep.subr.mxu0 0.0
    %621 = vmatpush1.msra.mxu0 0.0
    %622 = vmatprep.subr.mxu0 0.0
    %623 = vmatpush1.msra.mxu0 0.0
    %624 = vmatprep.subr.mxu0 0.0
    %625 = vmatpush1.msra.mxu0 0.0
    %626 = vmatprep.subr.mxu0 0.0
    %627 = vmatpush1.msra.mxu0 0.0
    %628 = vmatprep.subr.mxu0 0.0
    %629 = vmatpush1.msra.mxu0 0.0
    %630 = vmatprep.subr.mxu0 0.0
    %631 = vmatpush1.msra.mxu0 0.0
    %632 = vmatprep.subr.mxu0 0.0
    %633 = vmatpush1.msra.mxu0 0.0
    %634 = vmatprep.subr.mxu0 0.0
    %635 = vmatpush1.msra.mxu0 0.0
    %636 = vmatprep.subr.mxu0 0.0
    %637 = vmatpush1.msra.mxu0 0.0
    %638 = vmatprep.subr.mxu0 0.0
    %639 = vmatpush1.msra.mxu0 0.0
    %640 = vmatprep.subr.mxu0 0.0
    %641 = vmatpush1.msra.mxu0 0.0
    %642 = vmatprep.subr.mxu0 0.0
    %643 = vmatpush1.msra.mxu0 0.0
    %644 = vmatprep.subr.mxu0 0.0
    %645 = vmatpush1.msra.mxu0 0.0
    %646 = vmatprep.subr.mxu0 0.0
    %647 = vmatpush1.msra.mxu0 0.0
    %648 = vmatprep.subr.mxu0 0.0
    %649 = vmatpush1.msra.mxu0 0.0
    %650 = vmatprep.subr.mxu0 0.0
    %651 = vmatpush1.msra.mxu0 0.0
    %652 = vmatprep.subr.mxu0 0.0
    %653 = vmatpush1.msra.mxu0 0.0
    %654 = vmatprep.subr.mxu0 0.0
    %655 = vmatpush1.msra.mxu0 0.0
    %656 = vmatprep.subr.mxu0 0.0
    %657 = vmatpush1.msra.mxu0 0.0
    %658 = vmatprep.subr.mxu0 0.0
    %659 = vmatpush1.msra.mxu0 0.0
    %660 = vmatprep.subr.mxu0 0.0
    %661 = vmatpush1.msra.mxu0 0.0
    %662 = vmatprep.subr.mxu0 0.0
    %663 = vmatpush1.msra.mxu0 0.0
    %664 = vmatprep.subr.mxu0 0.0
    %665 = vmatpush1.msra.mxu0 0.0
    %666 = vmatprep.subr.mxu0 0.0
    %667 = vmatpush1.msra.mxu0 0.0
    %668 = vmatprep.subr.mxu0 0.0
    %669 = vmatpush1.msra.mxu0 0.0
    %670 = vmatprep.subr.mxu0 0.0
    %671 = vmatpush1.msra.mxu0 0.0
    %672 = vmatprep.subr.mxu0 0.0
    %673 = vmatpush1.msra.mxu0 0.0
    %674 = vmatprep.subr.mxu0 0.0
    %675 = vmatpush1.msra.mxu0 0.0
    %676 = vmatprep.subr.mxu0 0.0
    %677 = vmatpush1.msra.mxu0 0.0
    %678 = vmatprep.subr.mxu0 0.0
    %679 = vmatpush1.msra.mxu0 0.0
    %680 = vmatprep.mubr.f32.mxu0 0.0
    %681 = vmatmul.mubr.f32.gmra.mrb[0].mxu0 %v614
    %v682 = vpop.f32.mrb[0].mxu0
    %v683 = vadd.f32 0.0, %v682
    %v684 = vpop.f32.mrb[0].mxu0
    %685 = vdwg.mxu0
    %687 = vrot.lane.b32.xlu0 %v683, 124
    %v688 = vpop.permute.xlu0 %687
    %690 = vrot.lane.b32.xlu0 %v683, 4
    %v691 = vpop.permute.xlu0 %690
    %v693 = vsel %vm493, %v688, %v691
    %694 = vrot.lane.b32.xlu0 %v683, 116
    %v695 = vpop.permute.xlu0 %694
    %v697 = vsel %vm493, %v695, %v688
    %v698 = vmul.f32 %v410, %v683
    %699 = vrot.lane.b32.xlu0 %v683, 120
    %v700 = vpop.permute.xlu0 %699
    %v702 = vmul.f32 %v423, %v700
    %v703 = vsub.f32 %v698, %v702
    %v704 = vmul.f32 %v436, %v693
    %v705 = vadd.f32 %v703, %v704
    %v706 = vmul.f32 %v449, %v697
    %v707 = vsub.f32 %v705, %v706
    %v708 = vmul.f32 %v410, %v700
    %v709 = vmul.f32 %v423, %v683
    %v710 = vadd.f32 %v708, %v709
    %v711 = vmul.f32 %v436, %v697
    %v712 = vadd.f32 %v710, %v711
    %v713 = vmul.f32 %v449, %v693
    %v714 = vadd.f32 %v712, %v713
    %716 = vrot.lane.b32.xlu0 %v707, 126
    %v717 = vpop.permute.xlu0 %716
    %719 = vrot.lane.b32.xlu0 %v707, 6
    %v720 = vpop.permute.xlu0 %719
    %v722 = vsel %vm516, %v717, %v720
    %723 = vrot.lane.b32.xlu0 %v707, 122
    %v724 = vpop.permute.xlu0 %723
    %726 = vrot.lane.b32.xlu0 %v707, 2
    %v727 = vpop.permute.xlu0 %726
    %v729 = vsel %vm146, %v724, %v727
    %v730 = vsel %vm525, %v722, %v729
    %732 = vrot.lane.b32.xlu0 %v714, 126
    %v733 = vpop.permute.xlu0 %732
    %735 = vrot.lane.b32.xlu0 %v714, 6
    %v736 = vpop.permute.xlu0 %735
    %v738 = vsel %vm516, %v733, %v736
    %739 = vrot.lane.b32.xlu0 %v714, 122
    %v740 = vpop.permute.xlu0 %739
    %742 = vrot.lane.b32.xlu0 %v714, 2
    %v743 = vpop.permute.xlu0 %742
    %v745 = vsel %vm146, %v740, %v743
    %v746 = vsel %vm525, %v738, %v745
    %v747 = vmul.f32 %v457, %v707
    %v748 = vmul.f32 %v460, %v714
    %v749 = vsub.f32 %v747, %v748
    %v750 = vmul.f32 %v463, %v730
    %v751 = vadd.f32 %v749, %v750
    %v752 = vmul.f32 %v466, %v746
    %v753 = vsub.f32 %v751, %v752
    %v754 = vmul.f32 %v457, %v714
    %v755 = vmul.f32 %v460, %v707
    %v756 = vadd.f32 %v754, %v755
    %v757 = vmul.f32 %v463, %v746
    %v758 = vadd.f32 %v756, %v757
    %v759 = vmul.f32 %v466, %v730
    %v760 = vadd.f32 %v758, %v759
    %762 = vrot.lane.b32.xlu0 %v753, 127
    %v763 = vpop.permute.xlu0 %762
    %765 = vrot.lane.b32.xlu0 %v753, 7
    %v766 = vpop.permute.xlu0 %765
    %v768 = vsel %vm564, %v763, %v766
    %769 = vrot.lane.b32.xlu0 %v753, 121
    %v770 = vpop.permute.xlu0 %769
    %772 = vrot.lane.b32.xlu0 %v753, 1
    %v773 = vpop.permute.xlu0 %772
    %v775 = vsel %vm41, %v770, %v773
    %v776 = vsel %vm573, %v768, %v775
    %778 = vrot.lane.b32.xlu0 %v760, 127
    %v779 = vpop.permute.xlu0 %778
    %781 = vrot.lane.b32.xlu0 %v760, 7
    %v782 = vpop.permute.xlu0 %781
    %v784 = vsel %vm564, %v779, %v782
    %785 = vrot.lane.b32.xlu0 %v760, 121
    %v786 = vpop.permute.xlu0 %785
    %788 = vrot.lane.b32.xlu0 %v760, 1
    %v789 = vpop.permute.xlu0 %788
    %v791 = vsel %vm41, %v786, %v789
    %v792 = vsel %vm573, %v784, %v791
    %v793 = vmul.f32 %v474, %v753
    %v794 = vmul.f32 %v477, %v760
    %v795 = vsub.f32 %v793, %v794
    %v796 = vmul.f32 %v480, %v776
    %v797 = vadd.f32 %v795, %v796
    %v798 = vmul.f32 %v483, %v792
    %v799 = vsub.f32 %v797, %v798
    %v800 = vmul.f32 %v474, %v760
    %v801 = vmul.f32 %v477, %v753
    %v802 = vadd.f32 %v800, %v801
    %v803 = vmul.f32 %v480, %v792
    %v804 = vadd.f32 %v802, %v803
    %v805 = vmul.f32 %v483, %v776
    %v806 = vadd.f32 %v804, %v805
    %808 = vrot.lane.b32.xlu0 %v806, 8
    %v809 = vpop.permute.xlu0 %808
    %v811 = vsel %vm43, %v799, %v809
    %v812 = vld [vmem:[%s1 + $0x10] sm:$0xff]
    %v813 = vld [vmem:[%s1 + $0x18] sm:$0xff]
    %v815 = vsel %vm612, %v811, 0
    %817 = vmatprep.subr.mxu0 0.0
    %818 = vmatpush1.msra.mxu0 %v812
    %819 = vmatprep.subr.mxu0 0.0
    %820 = vmatpush1.msra.mxu0 %v813
    %821 = vmatprep.subr.mxu0 0.0
    %822 = vmatpush1.msra.mxu0 0.0
    %823 = vmatprep.subr.mxu0 0.0
    %824 = vmatpush1.msra.mxu0 0.0
    %825 = vmatprep.subr.mxu0 0.0
    %826 = vmatpush1.msra.mxu0 0.0
    %827 = vmatprep.subr.mxu0 0.0
    %828 = vmatpush1.msra.mxu0 0.0
    %829 = vmatprep.subr.mxu0 0.0
    %830 = vmatpush1.msra.mxu0 0.0
    %831 = vmatprep.subr.mxu0 0.0
    %832 = vmatpush1.msra.mxu0 0.0
    %833 = vmatprep.subr.mxu0 0.0
    %834 = vmatpush1.msra.mxu0 0.0
    %835 = vmatprep.subr.mxu0 0.0
    %836 = vmatpush1.msra.mxu0 0.0
    %837 = vmatprep.subr.mxu0 0.0
    %838 = vmatpush1.msra.mxu0 0.0
    %839 = vmatprep.subr.mxu0 0.0
    %840 = vmatpush1.msra.mxu0 0.0
    %841 = vmatprep.subr.mxu0 0.0
    %842 = vmatpush1.msra.mxu0 0.0
    %843 = vmatprep.subr.mxu0 0.0
    %844 = vmatpush1.msra.mxu0 0.0
    %845 = vmatprep.subr.mxu0 0.0
    %846 = vmatpush1.msra.mxu0 0.0
    %847 = vmatprep.subr.mxu0 0.0
    %848 = vmatpush1.msra.mxu0 0.0
    %849 = vmatprep.subr.mxu0 0.0
    %850 = vmatpush1.msra.mxu0 0.0
    %851 = vmatprep.subr.mxu0 0.0
    %852 = vmatpush1.msra.mxu0 0.0
    %853 = vmatprep.subr.mxu0 0.0
    %854 = vmatpush1.msra.mxu0 0.0
    %855 = vmatprep.subr.mxu0 0.0
    %856 = vmatpush1.msra.mxu0 0.0
    %857 = vmatprep.subr.mxu0 0.0
    %858 = vmatpush1.msra.mxu0 0.0
    %859 = vmatprep.subr.mxu0 0.0
    %860 = vmatpush1.msra.mxu0 0.0
    %861 = vmatprep.subr.mxu0 0.0
    %862 = vmatpush1.msra.mxu0 0.0
    %863 = vmatprep.subr.mxu0 0.0
    %864 = vmatpush1.msra.mxu0 0.0
    %865 = vmatprep.subr.mxu0 0.0
    %866 = vmatpush1.msra.mxu0 0.0
    %867 = vmatprep.subr.mxu0 0.0
    %868 = vmatpush1.msra.mxu0 0.0
    %869 = vmatprep.subr.mxu0 0.0
    %870 = vmatpush1.msra.mxu0 0.0
    %871 = vmatprep.subr.mxu0 0.0
    %872 = vmatpush1.msra.mxu0 0.0
    %873 = vmatprep.subr.mxu0 0.0
    %874 = vmatpush1.msra.mxu0 0.0
    %875 = vmatprep.subr.mxu0 0.0
    %876 = vmatpush1.msra.mxu0 0.0
    %877 = vmatprep.subr.mxu0 0.0
    %878 = vmatpush1.msra.mxu0 0.0
    %879 = vmatprep.subr.mxu0 0.0
    %880 = vmatpush1.msra.mxu0 0.0
    %881 = vmatprep.mubr.f32.mxu0 0.0
    %882 = vmatmul.mubr.f32.gmra.mrb[0].mxu0 %v815
    %v883 = vpop.f32.mrb[0].mxu0
    %v884 = vadd.f32 0.0, %v883
    %v885 = vpop.f32.mrb[0].mxu0
    %886 = vdwg.mxu0
    %vm887 = vcmp.eq.s32.totalorder %v33, %v29
    %v888 = vsel %vm887, 1, 0
    %v889 = vcvt.s32.f32 %v888
    %891 = vset.pattern.permute.xlu0 0
    %892 = vperm.xlu0 %891, %v131
    %v893 = vpop.permute.xlu0 %892
    %v895 = vmul.f32 %v893, %v884
    %v897 = vsel %vm43, %v889, 0
    %899 = vmatprep.subr.mxu0 0.0
    %900 = vmatpush1.msra.mxu0 %v895
    %901 = vmatprep.subr.mxu0 0.0
    %902 = vmatpush1.msra.mxu0 0.0
    %903 = vmatprep.subr.mxu0 0.0
    %904 = vmatpush1.msra.mxu0 0.0
    %905 = vmatprep.subr.mxu0 0.0
    %906 = vmatpush1.msra.mxu0 0.0
    %907 = vmatprep.subr.mxu0 0.0
    %908 = vmatpush1.msra.mxu0 0.0
    %909 = vmatprep.subr.mxu0 0.0
    %910 = vmatpush1.msra.mxu0 0.0
    %911 = vmatprep.subr.mxu0 0.0
    %912 = vmatpush1.msra.mxu0 0.0
    %913 = vmatprep.subr.mxu0 0.0
    %914 = vmatpush1.msra.mxu0 0.0
    %915 = vmatprep.subr.mxu0 0.0
    %916 = vmatpush1.msra.mxu0 0.0
    %917 = vmatprep.subr.mxu0 0.0
    %918 = vmatpush1.msra.mxu0 0.0
    %919 = vmatprep.subr.mxu0 0.0
    %920 = vmatpush1.msra.mxu0 0.0
    %921 = vmatprep.subr.mxu0 0.0
    %922 = vmatpush1.msra.mxu0 0.0
    %923 = vmatprep.subr.mxu0 0.0
    %924 = vmatpush1.msra.mxu0 0.0
    %925 = vmatprep.subr.mxu0 0.0
    %926 = vmatpush1.msra.mxu0 0.0
    %927 = vmatprep.subr.mxu0 0.0
    %928 = vmatpush1.msra.mxu0 0.0
    %929 = vmatprep.subr.mxu0 0.0
    %930 = vmatpush1.msra.mxu0 0.0
    %931 = vmatprep.subr.mxu0 0.0
    %932 = vmatpush1.msra.mxu0 0.0
    %933 = vmatprep.subr.mxu0 0.0
    %934 = vmatpush1.msra.mxu0 0.0
    %935 = vmatprep.subr.mxu0 0.0
    %936 = vmatpush1.msra.mxu0 0.0
    %937 = vmatprep.subr.mxu0 0.0
    %938 = vmatpush1.msra.mxu0 0.0
    %939 = vmatprep.subr.mxu0 0.0
    %940 = vmatpush1.msra.mxu0 0.0
    %941 = vmatprep.subr.mxu0 0.0
    %942 = vmatpush1.msra.mxu0 0.0
    %943 = vmatprep.subr.mxu0 0.0
    %944 = vmatpush1.msra.mxu0 0.0
    %945 = vmatprep.subr.mxu0 0.0
    %946 = vmatpush1.msra.mxu0 0.0
    %947 = vmatprep.subr.mxu0 0.0
    %948 = vmatpush1.msra.mxu0 0.0
    %949 = vmatprep.subr.mxu0 0.0
    %950 = vmatpush1.msra.mxu0 0.0
    %951 = vmatprep.subr.mxu0 0.0
    %952 = vmatpush1.msra.mxu0 0.0
    %953 = vmatprep.subr.mxu0 0.0
    %954 = vmatpush1.msra.mxu0 0.0
    %955 = vmatprep.subr.mxu0 0.0
    %956 = vmatpush1.msra.mxu0 0.0
    %957 = vmatprep.subr.mxu0 0.0
    %958 = vmatpush1.msra.mxu0 0.0
    %959 = vmatprep.subr.mxu0 0.0
    %960 = vmatpush1.msra.mxu0 0.0
    %961 = vmatprep.subr.mxu0 0.0
    %962 = vmatpush1.msra.mxu0 0.0
    %963 = vmatprep.mubr.f32.mxu0 0.0
    %964 = vmatmul.mubr.f32.gmra.mrb[0].mxu0 %v897
    %v965 = vpop.f32.mrb[0].mxu0
    %v966 = vadd.f32 0.0, %v965
    %v967 = vpop.f32.mrb[0].mxu0
    %968 = vdwg.mxu0
    %v969 = vmul.f32 %v966, %v966
    %v970 = vld [vmem:[%s1 + $0x20] sm:$0xff]
    %v971 = vld [vmem:[%s1 + $0x28] sm:$0xff]
    %v972 = vld [vmem:[%s1 + $0x30] sm:$0x1]
    %v973 = vld [vmem:[%s1 + $0x38] sm:$0xff]
    %v974 = vld [vmem:[%s1 + $0x40] sm:$0xff]
    %v975 = vld [vmem:[%s1 + $0x48] sm:$0x1]
    %v976 = vlaneseq
    %v977 = vshrl.u32 %v976, 7
    %v978 = vsub.s32 0, %v977
    %v979 = vrot.slane %v972, %v978
    %v981 = vsel %vm612, %v969, 0
    %983 = vmatprep.subr.mxu0 0.0
    %984 = vmatpush1.msra.mxu0 %v970
    %985 = vmatprep.subr.mxu0 0.0
    %986 = vmatpush1.msra.mxu0 %v971
    %987 = vmatprep.subr.mxu0 0.0
    %988 = vmatpush1.msra.mxu0 0.0
    %989 = vmatprep.subr.mxu0 0.0
    %990 = vmatpush1.msra.mxu0 0.0
    %991 = vmatprep.subr.mxu0 0.0
    %992 = vmatpush1.msra.mxu0 0.0
    %993 = vmatprep.subr.mxu0 0.0
    %994 = vmatpush1.msra.mxu0 0.0
    %995 = vmatprep.subr.mxu0 0.0
    %996 = vmatpush1.msra.mxu0 0.0
    %997 = vmatprep.subr.mxu0 0.0
    %998 = vmatpush1.msra.mxu0 0.0
    %999 = vmatprep.subr.mxu0 0.0
    %1000 = vmatpush1.msra.mxu0 0.0
    %1001 = vmatprep.subr.mxu0 0.0
    %1002 = vmatpush1.msra.mxu0 0.0
    %1003 = vmatprep.subr.mxu0 0.0
    %1004 = vmatpush1.msra.mxu0 0.0
    %1005 = vmatprep.subr.mxu0 0.0
    %1006 = vmatpush1.msra.mxu0 0.0
    %1007 = vmatprep.subr.mxu0 0.0
    %1008 = vmatpush1.msra.mxu0 0.0
    %1009 = vmatprep.subr.mxu0 0.0
    %1010 = vmatpush1.msra.mxu0 0.0
    %1011 = vmatprep.subr.mxu0 0.0
    %1012 = vmatpush1.msra.mxu0 0.0
    %1013 = vmatprep.subr.mxu0 0.0
    %1014 = vmatpush1.msra.mxu0 0.0
    %1015 = vmatprep.subr.mxu0 0.0
    %1016 = vmatpush1.msra.mxu0 0.0
    %1017 = vmatprep.subr.mxu0 0.0
    %1018 = vmatpush1.msra.mxu0 0.0
    %1019 = vmatprep.subr.mxu0 0.0
    %1020 = vmatpush1.msra.mxu0 0.0
    %1021 = vmatprep.subr.mxu0 0.0
    %1022 = vmatpush1.msra.mxu0 0.0
    %1023 = vmatprep.subr.mxu0 0.0
    %1024 = vmatpush1.msra.mxu0 0.0
    %1025 = vmatprep.subr.mxu0 0.0
    %1026 = vmatpush1.msra.mxu0 0.0
    %1027 = vmatprep.subr.mxu0 0.0
    %1028 = vmatpush1.msra.mxu0 0.0
    %1029 = vmatprep.subr.mxu0 0.0
    %1030 = vmatpush1.msra.mxu0 0.0
    %1031 = vmatprep.subr.mxu0 0.0
    %1032 = vmatpush1.msra.mxu0 0.0
    %1033 = vmatprep.subr.mxu0 0.0
    %1034 = vmatpush1.msra.mxu0 0.0
    %1035 = vmatprep.subr.mxu0 0.0
    %1036 = vmatpush1.msra.mxu0 0.0
    %1037 = vmatprep.subr.mxu0 0.0
    %1038 = vmatpush1.msra.mxu0 0.0
    %1039 = vmatprep.subr.mxu0 0.0
    %1040 = vmatpush1.msra.mxu0 0.0
    %1041 = vmatprep.subr.mxu0 0.0
    %1042 = vmatpush1.msra.mxu0 0.0
    %1043 = vmatprep.subr.mxu0 0.0
    %1044 = vmatpush1.msra.mxu0 0.0
    %1045 = vmatprep.subr.mxu0 0.0
    %1046 = vmatpush1.msra.mxu0 0.0
    %1047 = vmatprep.mubr.f32.mxu0 0.0
    %1048 = vmatmul.mubr.f32.gmra.mrb[0].mxu0 %v981
    %v1049 = vpop.f32.mrb[0].mxu0
    %v1050 = vadd.f32 %v979, %v1049
    %v1051 = vpop.f32.mrb[0].mxu0
    %1052 = vdwg.mxu0
    %v1053 = vmax.f32 %v1050, 0.0
    %v1054 = vlaneseq
    %v1055 = vshrl.u32 %v1054, 7
    %v1056 = vsub.s32 0, %v1055
    %v1057 = vrot.slane %v975, %v1056
    %v1059 = vsel %vm612, %v1053, 0
    %1061 = vmatprep.subr.mxu0 0.0
    %1062 = vmatpush1.msra.mxu0 %v973
    %1063 = vmatprep.subr.mxu0 0.0
    %1064 = vmatpush1.msra.mxu0 %v974
    %1065 = vmatprep.subr.mxu0 0.0
    %1066 = vmatpush1.msra.mxu0 0.0
    %1067 = vmatprep.subr.mxu0 0.0
    %1068 = vmatpush1.msra.mxu0 0.0
    %1069 = vmatprep.subr.mxu0 0.0
    %1070 = vmatpush1.msra.mxu0 0.0
    %1071 = vmatprep.subr.mxu0 0.0
    %1072 = vmatpush1.msra.mxu0 0.0
    %1073 = vmatprep.subr.mxu0 0.0
    %1074 = vmatpush1.msra.mxu0 0.0
    %1075 = vmatprep.subr.mxu0 0.0
    %1076 = vmatpush1.msra.mxu0 0.0
    %1077 = vmatprep.subr.mxu0 0.0
    %1078 = vmatpush1.msra.mxu0 0.0
    %1079 = vmatprep.subr.mxu0 0.0
    %1080 = vmatpush1.msra.mxu0 0.0
    %1081 = vmatprep.subr.mxu0 0.0
    %1082 = vmatpush1.msra.mxu0 0.0
    %1083 = vmatprep.subr.mxu0 0.0
    %1084 = vmatpush1.msra.mxu0 0.0
    %1085 = vmatprep.subr.mxu0 0.0
    %1086 = vmatpush1.msra.mxu0 0.0
    %1087 = vmatprep.subr.mxu0 0.0
    %1088 = vmatpush1.msra.mxu0 0.0
    %1089 = vmatprep.subr.mxu0 0.0
    %1090 = vmatpush1.msra.mxu0 0.0
    %1091 = vmatprep.subr.mxu0 0.0
    %1092 = vmatpush1.msra.mxu0 0.0
    %1093 = vmatprep.subr.mxu0 0.0
    %1094 = vmatpush1.msra.mxu0 0.0
    %1095 = vmatprep.subr.mxu0 0.0
    %1096 = vmatpush1.msra.mxu0 0.0
    %1097 = vmatprep.subr.mxu0 0.0
    %1098 = vmatpush1.msra.mxu0 0.0
    %1099 = vmatprep.subr.mxu0 0.0
    %1100 = vmatpush1.msra.mxu0 0.0
    %1101 = vmatprep.subr.mxu0 0.0
    %1102 = vmatpush1.msra.mxu0 0.0
    %1103 = vmatprep.subr.mxu0 0.0
    %1104 = vmatpush1.msra.mxu0 0.0
    %1105 = vmatprep.subr.mxu0 0.0
    %1106 = vmatpush1.msra.mxu0 0.0
    %1107 = vmatprep.subr.mxu0 0.0
    %1108 = vmatpush1.msra.mxu0 0.0
    %1109 = vmatprep.subr.mxu0 0.0
    %1110 = vmatpush1.msra.mxu0 0.0
    %1111 = vmatprep.subr.mxu0 0.0
    %1112 = vmatpush1.msra.mxu0 0.0
    %1113 = vmatprep.subr.mxu0 0.0
    %1114 = vmatpush1.msra.mxu0 0.0
    %1115 = vmatprep.subr.mxu0 0.0
    %1116 = vmatpush1.msra.mxu0 0.0
    %1117 = vmatprep.subr.mxu0 0.0
    %1118 = vmatpush1.msra.mxu0 0.0
    %1119 = vmatprep.subr.mxu0 0.0
    %1120 = vmatpush1.msra.mxu0 0.0
    %1121 = vmatprep.subr.mxu0 0.0
    %1122 = vmatpush1.msra.mxu0 0.0
    %1123 = vmatprep.subr.mxu0 0.0
    %1124 = vmatpush1.msra.mxu0 0.0
    %1125 = vmatprep.mubr.f32.mxu0 0.0
    %1126 = vmatmul.mubr.f32.gmra.mrb[0].mxu0 %v1059
    %v1127 = vpop.f32.mrb[0].mxu0
    %v1128 = vadd.f32 %v1057, %v1127
    %v1129 = vpop.f32.mrb[0].mxu0
    %1130 = vdwg.mxu0
    %vm1131 = vcmask 9216
    %1132 = vst.msk [vmem:[#allocation2] sm:$0x3] %vm1131, %v1128
    // Predicated region
    $region10: #{quantum_rot_qcgnn_forward.1} parent=1 // pred_check
      _
    $region11: #{quantum_rot_qcgnn_forward.1} parent=1 // pred_check_branch
      %1134 = sbr.rel (0) target = $region13
    $region12: #{quantum_rot_qcgnn_forward.1} parent=1 // pred_region
      %s1136 = ssub.s32 32, 32
      %1137 = vsyncadd [#allocation3], %s1136
      %s1139 = sshll.u32 [#allocation2], 4
      %s1140 = int_to_ptr.vmem [resolvable:$true] %s1139
      %1142 = dma.vmem_to_hbm [thread:$0]  %s1140, 32, %s2, [#allocation3]
    $region13: #{quantum_rot_qcgnn_forward.1} parent=1 // pred_fallthru
      _
    // Predicated region
    $region14: #{quantum_rot_qcgnn_forward.1} parent=1 // pred_check
      _
    $region15: #{quantum_rot_qcgnn_forward.1} parent=1 // pred_check_branch
      %1144 = sbr.rel (0) target = $region17
    $region16: #{quantum_rot_qcgnn_forward.1} parent=1 // pred_region
      %1145 = dma.done [#allocation3], 32
    $region17: #{quantum_rot_qcgnn_forward.1} parent=1 // pred_fallthru
      _
    %1146 = vsyncpa [#allocation3], 1

</llo_original>
